<compile_context>
chip_gen: v7x
topology: tpu7x:2x2x1
jax: 0.10.0
libtpu: 0.0.40
codegen_flags: <defaults>
</compile_context>

<pallas_src>
import jax
import jax.numpy as jnp
from jax.experimental import pallas as pl
from jax.experimental.pallas import tpu as pltpu

_BN_EPS = 1e-5


def _round_up(x, m):
    return (x + m - 1) // m * m


def _pick_tile(hw, desired):
    """Row-tile size (multiple of 16 for bf16 sublane packing) + padded row
    count.  Prefers a tile that divides HW exactly so no padded rows are ever
    read or written."""
    desired = max(16, desired - desired % 16)
    if hw <= desired:
        t = _round_up(hw, 16)           # single row tile per batch
        return t, t
    for cand in range(desired, 15, -16):
        if hw % cand == 0:
            return cand, hw             # exact tiling, no row padding
    return desired, _round_up(hw, desired)


def _bn_fold(gamma, beta, mean, var, eps=_BN_EPS):
    """Eval-mode BatchNorm -> per-channel (scale, shift)."""
    scale = gamma / jnp.sqrt(var + eps)
    shift = beta - mean * scale
    return scale, shift


# ---------------------------------------------------------------------------
# Fused kernel: Conv1x1+BN+ReLU -> (virtual concat) -> trans_conv+BN+ReLU
# ---------------------------------------------------------------------------
def _fused_kernel(x_ref, t_ref, pb_ref, w1_ref, b1_ref, w3x_ref, w3t_ref, o_ref):
    f32 = jnp.float32

    # Branch 1: ReLU(BN1(Conv1x1(x))), BN folded into w1/b1.
    h = jnp.dot(x_ref[0], w1_ref[...], preferred_element_type=f32) + b1_ref[...]
    h = jnp.maximum(h, 0.0).astype(jnp.bfloat16)

    # trans_conv over the channel concat, decomposed per concat piece so the
    # concatenated tensor never hits HBM.  The ASPP-pool piece is constant
    # over H*W for a given batch and arrives as a per-batch bias that already
    # includes the trans_conv bias and BN3 shift.
    acc = jnp.dot(h, w3x_ref[...], preferred_element_type=f32)
    acc = acc + jnp.dot(t_ref[0], w3t_ref[...], preferred_element_type=f32)
    acc = acc + pb_ref[0]
    o_ref[0] = jnp.maximum(acc, 0.0)


# ---------------------------------------------------------------------------
# Wrapper
# ---------------------------------------------------------------------------
def trans_conv_forward(params, x, t1, t2, t3, *, tile_m=512):
    """x: (B, Co, H, W) NCHW f32.  t1/t2/t3: (B, H, W, Ci) NHWC f32 (the module
    permutes them to NCHW before the concat; channel order is preserved either
    way).  Returns (B, H, W, Co) NHWC f32, matching the module's final permute."""
    B, Co, H, W = x.shape
    C1, C2, C3 = t1.shape[-1], t2.shape[-1], t3.shape[-1]
    Ct = C1 + C2 + C3
    HW = H * W
    tm, HWp = _pick_tile(HW, tile_m)
    f32 = jnp.float32

    # --- fold eval-mode BatchNorm (per-channel) into the 1x1 convs ----------
    s1, h1 = _bn_fold(params["bn1_w"], params["bn1_b"], params["bn1_m"], params["bn1_v"])
    s2, h2 = _bn_fold(params["bn2_w"], params["bn2_b"], params["bn2_m"], params["bn2_v"])
    s3, h3 = _bn_fold(params["bn3_w"], params["bn3_b"], params["bn3_m"], params["bn3_v"])

    w1m = jnp.transpose(params["conv_w"][:, :, 0, 0]) * s1[None, :]     # (Co, Co)
    b1v = (params["conv_b"] * s1 + h1).reshape(1, Co).astype(f32)

    w2m = jnp.transpose(params["pool_w"][:, :, 0, 0]) * s2[None, :]     # (Co, Co), bias=False

    w3m = jnp.transpose(params["trans_w"][:, :, 0, 0]) * s3[None, :]    # (Cin, Co)
    b3v = (params["trans_b"] * s3 + h3).astype(f32)                     # (Co,)
    w3x = w3m[:Co]                       # x_con1x1 slice
    w3t = w3m[Co:Co + Ct]                # [T1 | T2 | T3] slice (concat order)
    w3p = w3m[Co + Ct:]                  # x_pool slice

    # --- activation prep (one XLA pass): NCHW->rows, channel-concat the T's --
    x_rows = jnp.transpose(x, (0, 2, 3, 1)).reshape(B, HW, Co).astype(jnp.bfloat16)
    t_rows = jnp.concatenate(
        [t1.reshape(B, HW, C1), t2.reshape(B, HW, C2), t3.reshape(B, HW, C3)],
        axis=-1).astype(jnp.bfloat16)
    if HWp != HW:
        pad = ((0, 0), (0, HWp - HW), (0, 0))
        x_rows = jnp.pad(x_rows, pad)
        t_rows = jnp.pad(t_rows, pad)

    # --- ASPP pooling branch -> per-batch bias (tiny (B,Co) math) -----------
    # AdaptiveAvgPool2d(1) == per-batch channel mean (computed alongside the
    # prep pass over x); bilinear upsample of a 1x1 map is a broadcast, so its
    # trans_conv contribution folds into a bias applied before the final ReLU.
    mean = jnp.mean(x.astype(f32), axis=(2, 3))                          # (B, Co)
    pv = jnp.maximum(mean @ w2m.astype(f32) + h2[None, :], 0.0)          # (B, Co)
    pool_bias = (pv @ w3p.astype(f32) + b3v[None, :]).reshape(B, 1, Co).astype(f32)

    # MXU operands in bf16.
    w1m = w1m.astype(jnp.bfloat16)
    w3x = w3x.astype(jnp.bfloat16)
    w3t = w3t.astype(jnp.bfloat16)

    # --- fused Pallas kernel -------------------------------------------------
    n_tiles = HWp // tm
    const = lambda shape: pl.BlockSpec(shape, lambda b, i: (0, 0))
    out = pl.pallas_call(
        _fused_kernel,
        out_shape=jax.ShapeDtypeStruct((B, HWp, Co), f32),
        grid_spec=pltpu.PrefetchScalarGridSpec(
            num_scalar_prefetch=0,
            grid=(B, n_tiles),
            in_specs=[
                pl.BlockSpec((1, tm, Co), lambda b, i: (b, i, 0)),   # x rows
                pl.BlockSpec((1, tm, Ct), lambda b, i: (b, i, 0)),   # [T1|T2|T3] rows
                pl.BlockSpec((1, 1, Co), lambda b, i: (b, 0, 0)),    # per-batch pool bias
                const((Co, Co)),     # w1  (self.Conv, BN1 folded)
                const((1, Co)),      # b1
                const((Co, Co)),     # w3 . x_con1x1 slice (BN3 folded)
                const((Ct, Co)),     # w3 . [T1|T2|T3] slice (BN3 folded)
            ],
            out_specs=pl.BlockSpec((1, tm, Co), lambda b, i: (b, i, 0)),
        ),
        compiler_params=pltpu.CompilerParams(
            dimension_semantics=("parallel", "parallel")),
    )(x_rows, t_rows, pool_bias, w1m, b1v, w3x, w3t)

    if HWp != HW:
        out = out[:, :HW]
    return out.reshape(B, H, W, Co)


# ---------------------------------------------------------------------------
# Deterministic synthetic parameters (torch layouts; fresh eval-mode BN stats,
# but the folding above is per-channel so trained stats work unchanged).
# ---------------------------------------------------------------------------
def init_params(key, Co, C1, C2, C3):
    Cin = 2 * Co + C1 + C2 + C3          # cat([x_con1x1, T1, T2, T3, x_pool])
    ks = jax.random.split(key, 5)
    n = lambda k, s: 0.05 * jax.random.normal(k, s, dtype=jnp.float32)
    ones = lambda c: jnp.ones((c,), jnp.float32)
    zeros = lambda c: jnp.zeros((c,), jnp.float32)
    return {
        "conv_w": n(ks[0], (Co, Co, 1, 1)), "conv_b": n(ks[1], (Co,)),
        "bn1_w": ones(Co), "bn1_b": zeros(Co), "bn1_m": zeros(Co), "bn1_v": ones(Co),
        "pool_w": n(ks[2], (Co, Co, 1, 1)),                      # bias=False
        "bn2_w": ones(Co), "bn2_b": zeros(Co), "bn2_m": zeros(Co), "bn2_v": ones(Co),
        "trans_w": n(ks[3], (Co, Cin, 1, 1)), "trans_b": n(ks[4], (Co,)),
        "bn3_w": ones(Co), "bn3_b": zeros(Co), "bn3_m": zeros(Co), "bn3_v": ones(Co),
    }


if __name__ == "__main__":
    # Small shapes: batch=2, out_channels=64, 16x16 spatial, 64-ch transformer
    # feature maps (in_channels = 2*64 + 3*64 = 320).
    B, Co, H, W = 2, 64, 16, 16
    C1 = C2 = C3 = 64
    key = jax.random.PRNGKey(0)
    kp, kx, k1, k2, k3 = jax.random.split(key, 5)
    params = init_params(kp, Co, C1, C2, C3)
    x = jax.random.normal(kx, (B, Co, H, W), dtype=jnp.float32)      # NCHW
    t1 = jax.random.normal(k1, (B, H, W, C1), dtype=jnp.float32)     # NHWC
    t2 = jax.random.normal(k2, (B, H, W, C2), dtype=jnp.float32)
    t3 = jax.random.normal(k3, (B, H, W, C3), dtype=jnp.float32)

    out = jax.jit(trans_conv_forward)(params, x, t1, t2, t3)
    jax.block_until_ready(out)
    assert out.shape == (B, H, W, Co) and out.dtype == jnp.float32
    print("KERNEL_OK")
</pallas_src>

<mosaic_0001>
module attributes {stable_mosaic.version = 11 : i64} {
  func.func @_fused_kernel(%arg0: i32, %arg1: i32, %arg2: memref<1x256x64xbf16, #tpu.memory_space<vmem>>, %arg3: memref<1x256x192xbf16, #tpu.memory_space<vmem>>, %arg4: memref<1x1x64xf32, #tpu.memory_space<vmem>>, %arg5: memref<64x64xbf16, #tpu.memory_space<vmem>>, %arg6: memref<1x64xf32, #tpu.memory_space<vmem>>, %arg7: memref<64x64xbf16, #tpu.memory_space<vmem>>, %arg8: memref<192x64xbf16, #tpu.memory_space<vmem>>, %arg9: memref<1x256x64xf32, #tpu.memory_space<vmem>>) attributes {dimension_semantics = [#tpu.dimension_semantics<parallel>, #tpu.dimension_semantics<parallel>], iteration_bounds = array<i64: 2, 1>, scalar_prefetch = 0 : i64, scratch_operands = 0 : i64, tpu.core_type = #tpu.core_type<tc>, window_params = [{transform_indices = @transform_0, window_bounds = array<i64: 1, 256, 64>}, {transform_indices = @transform_1, window_bounds = array<i64: 1, 256, 192>}, {transform_indices = @transform_2, window_bounds = array<i64: 1, 1, 64>}, {pipeline_mode = #tpu.pipeline_mode<synchronous>, transform_indices = @transform_3, window_bounds = array<i64: 64, 64>}, {pipeline_mode = #tpu.pipeline_mode<synchronous>, transform_indices = @transform_4, window_bounds = array<i64: 1, 64>}, {pipeline_mode = #tpu.pipeline_mode<synchronous>, transform_indices = @transform_5, window_bounds = array<i64: 64, 64>}, {pipeline_mode = #tpu.pipeline_mode<synchronous>, transform_indices = @transform_6, window_bounds = array<i64: 192, 64>}, {transform_indices = @transform_7, window_bounds = array<i64: 1, 256, 64>}]} {
    %c0 = arith.constant 0 : index
    %c0_0 = arith.constant 0 : index
    %c0_1 = arith.constant 0 : index
    %0 = vector.load %arg2[%c0, %c0_0, %c0_1] : memref<1x256x64xbf16, #tpu.memory_space<vmem>>, vector<1x256x64xbf16>
    %1 = vector.shape_cast %0 : vector<1x256x64xbf16> to vector<256x64xbf16>
    %c0_2 = arith.constant 0 : index
    %c0_3 = arith.constant 0 : index
    %2 = vector.load %arg5[%c0_2, %c0_3] : memref<64x64xbf16, #tpu.memory_space<vmem>>, vector<64x64xbf16>
    %cst = arith.constant dense<0.000000e+00> : vector<256x64xf32>
    %3 = tpu.matmul %1, %2, %cst {dimension_numbers = #tpu.dot_dimension_numbers<[1], [0], [0], [1], [0, 0, 1, 1], [], []>} : vector<256x64xbf16>, vector<64x64xbf16>, vector<256x64xf32> -> vector<256x64xf32>
    %c0_4 = arith.constant 0 : index
    %c0_5 = arith.constant 0 : index
    %4 = vector.load %arg6[%c0_4, %c0_5] : memref<1x64xf32, #tpu.memory_space<vmem>>, vector<1x64xf32>
    %5 = vector.broadcast %4 : vector<1x64xf32> to vector<256x64xf32>
    %6 = arith.addf %3, %5 : vector<256x64xf32>
    %cst_6 = arith.constant 0.000000e+00 : f32
    %7 = vector.broadcast %cst_6 : f32 to vector<256x64xf32>
    %8 = arith.maximumf %6, %7 : vector<256x64xf32>
    %9 = arith.truncf %8 : vector<256x64xf32> to vector<256x64xbf16>
    %c0_7 = arith.constant 0 : index
    %c0_8 = arith.constant 0 : index
    %10 = vector.load %arg7[%c0_7, %c0_8] : memref<64x64xbf16, #tpu.memory_space<vmem>>, vector<64x64xbf16>
    %cst_9 = arith.constant dense<0.000000e+00> : vector<256x64xf32>
    %11 = tpu.matmul %9, %10, %cst_9 {dimension_numbers = #tpu.dot_dimension_numbers<[1], [0], [0], [1], [0, 0, 1, 1], [], []>} : vector<256x64xbf16>, vector<64x64xbf16>, vector<256x64xf32> -> vector<256x64xf32>
    %c0_10 = arith.constant 0 : index
    %c0_11 = arith.constant 0 : index
    %c0_12 = arith.constant 0 : index
    %12 = vector.load %arg3[%c0_10, %c0_11, %c0_12] : memref<1x256x192xbf16, #tpu.memory_space<vmem>>, vector<1x256x192xbf16>
    %13 = vector.shape_cast %12 : vector<1x256x192xbf16> to vector<256x192xbf16>
    %c0_13 = arith.constant 0 : index
    %c0_14 = arith.constant 0 : index
    %14 = vector.load %arg8[%c0_13, %c0_14] : memref<192x64xbf16, #tpu.memory_space<vmem>>, vector<192x64xbf16>
    %cst_15 = arith.constant dense<0.000000e+00> : vector<256x64xf32>
    %15 = tpu.matmul %13, %14, %cst_15 {dimension_numbers = #tpu.dot_dimension_numbers<[1], [0], [0], [1], [0, 0, 1, 1], [], []>} : vector<256x192xbf16>, vector<192x64xbf16>, vector<256x64xf32> -> vector<256x64xf32>
    %16 = arith.addf %11, %15 : vector<256x64xf32>
    %c0_16 = arith.constant 0 : index
    %c0_17 = arith.constant 0 : index
    %c0_18 = arith.constant 0 : index
    %17 = vector.load %arg4[%c0_16, %c0_17, %c0_18] : memref<1x1x64xf32, #tpu.memory_space<vmem>>, vector<1x1x64xf32>
    %18 = vector.shape_cast %17 : vector<1x1x64xf32> to vector<1x64xf32>
    %19 = vector.broadcast %18 : vector<1x64xf32> to vector<256x64xf32>
    %20 = arith.addf %16, %19 : vector<256x64xf32>
    %cst_19 = arith.constant 0.000000e+00 : f32
    %21 = vector.broadcast %cst_19 : f32 to vector<256x64xf32>
    %22 = arith.maximumf %20, %21 : vector<256x64xf32>
    %c0_20 = arith.constant 0 : index
    %c0_21 = arith.constant 0 : index
    %c0_22 = arith.constant 0 : index
    %23 = vector.load %arg9[%c0_20, %c0_21, %c0_22] : memref<1x256x64xf32, #tpu.memory_space<vmem>>, vector<1x256x64xf32>
    %24 = vector.shape_cast %23 : vector<1x256x64xf32> to vector<256x64xf32>
    %25 = vector.shape_cast %22 : vector<256x64xf32> to vector<1x256x64xf32>
    tpu.vector_store %arg9[%c0_20, %c0_21, %c0_22], %25 {strides = array<i32>} : memref<1x256x64xf32, #tpu.memory_space<vmem>>, vector<1x256x64xf32>,
    return
  }
  func.func @transform_0(%arg0: i32, %arg1: i32) -> (i32, i32, i32) {
    %c0_i32 = arith.constant 0 : i32
    %c0_i32_0 = arith.constant 0 : i32
    return %arg0, %arg1, %c0_i32 : i32, i32, i32
  }
  func.func @transform_1(%arg0: i32, %arg1: i32) -> (i32, i32, i32) {
    %c0_i32 = arith.constant 0 : i32
    %c0_i32_0 = arith.constant 0 : i32
    return %arg0, %arg1, %c0_i32 : i32, i32, i32
  }
  func.func @transform_2(%arg0: i32, %arg1: i32) -> (i32, i32, i32) {
    %c0_i32 = arith.constant 0 : i32
    %c0_i32_0 = arith.constant 0 : i32
    %c0_i32_1 = arith.constant 0 : i32
    return %arg0, %c0_i32, %c0_i32_0 : i32, i32, i32
  }
  func.func @transform_3(%arg0: i32, %arg1: i32) -> (i32, i32) {
    %c0_i32 = arith.constant 0 : i32
    %c0_i32_0 = arith.constant 0 : i32
    %c0_i32_1 = arith.constant 0 : i32
    return %c0_i32, %c0_i32_0 : i32, i32
  }
  func.func @transform_4(%arg0: i32, %arg1: i32) -> (i32, i32) {
    %c0_i32 = arith.constant 0 : i32
    %c0_i32_0 = arith.constant 0 : i32
    %c0_i32_1 = arith.constant 0 : i32
    return %c0_i32, %c0_i32_0 : i32, i32
  }
  func.func @transform_5(%arg0: i32, %arg1: i32) -> (i32, i32) {
    %c0_i32 = arith.constant 0 : i32
    %c0_i32_0 = arith.constant 0 : i32
    %c0_i32_1 = arith.constant 0 : i32
    return %c0_i32, %c0_i32_0 : i32, i32
  }
  func.func @transform_6(%arg0: i32, %arg1: i32) -> (i32, i32) {
    %c0_i32 = arith.constant 0 : i32
    %c0_i32_0 = arith.constant 0 : i32
    %c0_i32_1 = arith.constant 0 : i32
    return %c0_i32, %c0_i32_0 : i32, i32
  }
  func.func @transform_7(%arg0: i32, %arg1: i32) -> (i32, i32, i32) {
    %c0_i32 = arith.constant 0 : i32
    %c0_i32_0 = arith.constant 0 : i32
    return %arg0, %arg1, %c0_i32 : i32, i32, i32
  }
}

</mosaic_0001>

<llo_original>
// kernel: trans_conv_forward.1
$region0: #{trans_conv_forward.1}
  #allocation0 [shape = 'u32[]', space=smem, size = 0x4, offset = 0x4, fixed_abs, tag = 'smem constant byte address 0x4 - core index']
  #allocation1 [shape = 'u32[144,128]{1,0:T(1,128)}', space=vmem, size = 0x12000, scoped, tag = 'internal scratch']
  %s0 = inlined_call_operand.vmem [shape: bf16[2,256,64], index: 0, kind: input, shape index: {}]
  %s1 = inlined_call_operand.vmem [shape: bf16[2,256,192], index: 1, kind: input, shape index: {}]
  %s2 = inlined_call_operand.vmem [shape: f32[2,1,64], index: 2, kind: input, shape index: {}]
  %s3 = inlined_call_operand.vmem [shape: bf16[64,64], index: 3, kind: input, shape index: {}]
  %s4 = inlined_call_operand.vmem [shape: f32[1,64], index: 4, kind: input, shape index: {}]
  %s5 = inlined_call_operand.vmem [shape: bf16[64,64], index: 5, kind: input, shape index: {}]
  %s6 = inlined_call_operand.vmem [shape: bf16[192,64], index: 6, kind: input, shape index: {}]
  %s7 = inlined_call_operand.hbm [shape: f32[2,256,64], index: 7, kind: output, shape index: {}]
  %s8 = sld [smem:[#allocation0]]
  $region61: #{trans_conv_forward.1} parent=0
    _
  %s10 = ssub.s32 1, %s8
  %s11 = scalar_select 0, %s10, %s8
  $region1: #{trans_conv_forward.1} parent=0
    #allocation2 [shape = 'u8[262144]{0}', space=vmem, size = 0x40000, scoped, tag = 'output window, operand 0']
    #allocation3 [shape = 's32[2]{0}', space=sflag, size = 0x8, scoped, tag = 'scoped memory for trans_conv_forward.1']
    %12 = vsyncpa [#allocation3], 0
    %s13 = scalar_lea.sflag [#allocation3], 1
    %14 = vsyncpa %s13, 0
    loop: start=0, step=1, limit=4
    $region2: #{trans_conv_forward.1} parent=1 // loop_pre_header
      _
    $region3: #{trans_conv_forward.1} parent=1 // loop_header
      %s16 = sphi 0, %s20
      %p17 = scmp.ge.s32.totalorder %s16, 4
      %s23 = sphi 0, %s35
      %s24 = sphi 0, %s31
      %s25 = sphi 0, %s23
      %s26 = sphi 0, %s24
      %s27 = sphi 0, %s25
      %s28 = sphi 0, %s26
      %s40 = sphi 0, %s42
      %s43 = sphi 0, %s40
      %s44 = sphi 0, %s43
      %s60 = sphi 0, %s44
      %s68 = sphi 0, %s70
      %s71 = sphi 0, %s68
      %s72 = sphi 0, %s71
      %s88 = sphi 0, %s72
      %s94 = sphi 0, %s96
      %s97 = sphi 0, %s94
      %s98 = sphi 0, %s97
      %s114 = sphi 0, %s98
      %s118 = sphi 0, %s118
      %s120 = sphi 0, %s118
      %s121 = sphi 0, %s120
      %s135 = sphi 0, %s121
      %s139 = sphi 0, %s139
      %s141 = sphi 0, %s139
      %s142 = sphi 0, %s141
      %s156 = sphi 0, %s142
      %s160 = sphi 0, %s160
      %s162 = sphi 0, %s160
      %s163 = sphi 0, %s162
      %s177 = sphi 0, %s163
      %s181 = sphi 0, %s181
      %s183 = sphi 0, %s181
      %s184 = sphi 0, %s183
      %s198 = sphi 0, %s184
      %s206 = sphi 0, %s208
      %s209 = sphi 0, %s206
      %s210 = sphi 0, %s209
      %s226 = sphi 0, %s210
    $region4: #{trans_conv_forward.1} parent=1 // loop_header_branch
      %19 = sbr.rel (%p17) target = $region8
    $region5: #{trans_conv_forward.1} parent=1 // loop_body
      %s21 = ssub.s32 %s16, 1
      %s22 = ssub.s32 %s16, 2
      %s29 = sadd.s32 1, %s24
      %p30 = scmp.ge.s32.totalorder %s29, 1
      %s31 = scalar_select %p30, 0, %s29
      %s32 = sadd.s32 1, %s23
      %s33 = scalar_select %p30, %s32, %s23
      %p34 = scmp.ge.s32.totalorder %s33, 2
      %s35 = scalar_select %p34, 0, %s33
      %s36 = ssub.s32 %s23, %s35
      %s37 = ssub.s32 %s24, %s31
      %s38 = sor.u32 %s36, %s37
      %p39 = scmp.eq.s32.totalorder %s38, 0
      %s41 = sadd.s32 %s40, 1
      %s42 = scalar_select %p39, %s40, %s41
      %p45 = pneg %p39
      %p46 = scmp.eq.s32.totalorder %s16, 1
      %p47 = por %p45, %p46
      %p48 = scmp.ne.s32.totalorder %s40, %s43
      %p49 = scmp.eq.s32.totalorder %s16, 0
      %p50 = por %p48, %p49
      %p51 = scmp.ne.s32.totalorder %s40, %s43
      %p52 = scmp.eq.s32.totalorder %s21, 1
      %p53 = por %p51, %p52
      %p54 = scmp.ne.s32.totalorder %s43, %s44
      %p55 = scmp.eq.s32.totalorder %s21, 0
      %p56 = por %p54, %p55
      %p57 = scmp.ne.s32.totalorder %s43, %s44
      %p58 = scmp.eq.s32.totalorder %s22, 1
      %p59 = por %p57, %p58
      %p61 = scmp.ne.s32.totalorder %s44, %s60
      %p62 = scmp.eq.s32.totalorder %s22, 0
      %p63 = por %p61, %p62
      %s64 = ssub.s32 %s23, %s35
      %s65 = ssub.s32 %s24, %s31
      %s66 = sor.u32 %s64, %s65
      %p67 = scmp.eq.s32.totalorder %s66, 0
      %s69 = sadd.s32 %s68, 1
      %s70 = scalar_select %p67, %s68, %s69
      %p73 = pneg %p67
      %p74 = scmp.eq.s32.totalorder %s16, 1
      %p75 = por %p73, %p74
      %p76 = scmp.ne.s32.totalorder %s68, %s71
      %p77 = scmp.eq.s32.totalorder %s16, 0
      %p78 = por %p76, %p77
      %p79 = scmp.ne.s32.totalorder %s68, %s71
      %p80 = scmp.eq.s32.totalorder %s21, 1
      %p81 = por %p79, %p80
      %p82 = scmp.ne.s32.totalorder %s71, %s72
      %p83 = scmp.eq.s32.totalorder %s21, 0
      %p84 = por %p82, %p83
      %p85 = scmp.ne.s32.totalorder %s71, %s72
      %p86 = scmp.eq.s32.totalorder %s22, 1
      %p87 = por %p85, %p86
      %p89 = scmp.ne.s32.totalorder %s72, %s88
      %p90 = scmp.eq.s32.totalorder %s22, 0
      %p91 = por %p89, %p90
      %s92 = ssub.s32 %s23, %s35
      %p93 = scmp.eq.s32.totalorder %s92, 0
      %s95 = sadd.s32 %s94, 1
      %s96 = scalar_select %p93, %s94, %s95
      %p99 = pneg %p93
      %p100 = scmp.eq.s32.totalorder %s16, 1
      %p101 = por %p99, %p100
      %p102 = scmp.ne.s32.totalorder %s94, %s97
      %p103 = scmp.eq.s32.totalorder %s16, 0
      %p104 = por %p102, %p103
      %p105 = scmp.ne.s32.totalorder %s94, %s97
      %p106 = scmp.eq.s32.totalorder %s21, 1
      %p107 = por %p105, %p106
      %p108 = scmp.ne.s32.totalorder %s97, %s98
      %p109 = scmp.eq.s32.totalorder %s21, 0
      %p110 = por %p108, %p109
      %p111 = scmp.ne.s32.totalorder %s97, %s98
      %p112 = scmp.eq.s32.totalorder %s22, 1
      %p113 = por %p111, %p112
      %p115 = scmp.ne.s32.totalorder %s98, %s114
      %p116 = scmp.eq.s32.totalorder %s22, 0
      %p117 = por %p115, %p116
      %s119 = sadd.s32 %s118, 1
      %p122 = scmp.eq.s32.totalorder %s16, 1
      %p123 = scmp.ne.s32.totalorder %s118, %s120
      %p124 = scmp.eq.s32.totalorder %s16, 0
      %p125 = por %p123, %p124
      %p126 = scmp.ne.s32.totalorder %s118, %s120
      %p127 = scmp.eq.s32.totalorder %s21, 1
      %p128 = por %p126, %p127
      %p129 = scmp.ne.s32.totalorder %s120, %s121
      %p130 = scmp.eq.s32.totalorder %s21, 0
      %p131 = por %p129, %p130
      %p132 = scmp.ne.s32.totalorder %s120, %s121
      %p133 = scmp.eq.s32.totalorder %s22, 1
      %p134 = por %p132, %p133
      %p136 = scmp.ne.s32.totalorder %s121, %s135
      %p137 = scmp.eq.s32.totalorder %s22, 0
      %p138 = por %p136, %p137
      %s140 = sadd.s32 %s139, 1
      %p143 = scmp.eq.s32.totalorder %s16, 1
      %p144 = scmp.ne.s32.totalorder %s139, %s141
      %p145 = scmp.eq.s32.totalorder %s16, 0
      %p146 = por %p144, %p145
      %p147 = scmp.ne.s32.totalorder %s139, %s141
      %p148 = scmp.eq.s32.totalorder %s21, 1
      %p149 = por %p147, %p148
      %p150 = scmp.ne.s32.totalorder %s141, %s142
      %p151 = scmp.eq.s32.totalorder %s21, 0
      %p152 = por %p150, %p151
      %p153 = scmp.ne.s32.totalorder %s141, %s142
      %p154 = scmp.eq.s32.totalorder %s22, 1
      %p155 = por %p153, %p154
      %p157 = scmp.ne.s32.totalorder %s142, %s156
      %p158 = scmp.eq.s32.totalorder %s22, 0
      %p159 = por %p157, %p158
      %s161 = sadd.s32 %s160, 1
      %p164 = scmp.eq.s32.totalorder %s16, 1
      %p165 = scmp.ne.s32.totalorder %s160, %s162
      %p166 = scmp.eq.s32.totalorder %s16, 0
      %p167 = por %p165, %p166
      %p168 = scmp.ne.s32.totalorder %s160, %s162
      %p169 = scmp.eq.s32.totalorder %s21, 1
      %p170 = por %p168, %p169
      %p171 = scmp.ne.s32.totalorder %s162, %s163
      %p172 = scmp.eq.s32.totalorder %s21, 0
      %p173 = por %p171, %p172
      %p174 = scmp.ne.s32.totalorder %s162, %s163
      %p175 = scmp.eq.s32.totalorder %s22, 1
      %p176 = por %p174, %p175
      %p178 = scmp.ne.s32.totalorder %s163, %s177
      %p179 = scmp.eq.s32.totalorder %s22, 0
      %p180 = por %p178, %p179
      %s182 = sadd.s32 %s181, 1
      %p185 = scmp.eq.s32.totalorder %s16, 1
      %p186 = scmp.ne.s32.totalorder %s181, %s183
      %p187 = scmp.eq.s32.totalorder %s16, 0
      %p188 = por %p186, %p187
      %p189 = scmp.ne.s32.totalorder %s181, %s183
      %p190 = scmp.eq.s32.totalorder %s21, 1
      %p191 = por %p189, %p190
      %p192 = scmp.ne.s32.totalorder %s183, %s184
      %p193 = scmp.eq.s32.totalorder %s21, 0
      %p194 = por %p192, %p193
      %p195 = scmp.ne.s32.totalorder %s183, %s184
      %p196 = scmp.eq.s32.totalorder %s22, 1
      %p197 = por %p195, %p196
      %p199 = scmp.ne.s32.totalorder %s184, %s198
      %p200 = scmp.eq.s32.totalorder %s22, 0
      %p201 = por %p199, %p200
      %s202 = ssub.s32 %s23, %s35
      %s203 = ssub.s32 %s24, %s31
      %s204 = sor.u32 %s202, %s203
      %p205 = scmp.eq.s32.totalorder %s204, 0
      %s207 = sadd.s32 %s206, 1
      %s208 = scalar_select %p205, %s206, %s207
      %p211 = pneg %p205
      %p212 = scmp.eq.s32.totalorder %s16, 1
      %p213 = por %p211, %p212
      %p214 = scmp.ne.s32.totalorder %s206, %s209
      %p215 = scmp.eq.s32.totalorder %s16, 0
      %p216 = por %p214, %p215
      %p217 = scmp.ne.s32.totalorder %s206, %s209
      %p218 = scmp.eq.s32.totalorder %s21, 1
      %p219 = por %p217, %p218
      %p220 = scmp.ne.s32.totalorder %s209, %s210
      %p221 = scmp.eq.s32.totalorder %s21, 0
      %p222 = por %p220, %p221
      %p223 = scmp.ne.s32.totalorder %s209, %s210
      %p224 = scmp.eq.s32.totalorder %s22, 1
      %p225 = por %p223, %p224
      %p227 = scmp.ne.s32.totalorder %s210, %s226
      %p228 = scmp.eq.s32.totalorder %s22, 0
      %p229 = por %p227, %p228
      %p230 = scmp.le.s32.totalorder 1, %s16
      %p231 = scmp.lt.s32.totalorder %s16, 3
      %p232 = pnand %p230, %p231
      %p233 = pneg %p232
      // Predicated region
      $region9: #{trans_conv_forward.1} parent=5 // pred_check
        _
      $region10: #{trans_conv_forward.1} parent=5 // pred_check_branch
        %235 = sbr.rel (%p232) target = $region12
      $region11: #{trans_conv_forward.1} parent=5 // pred_region
        %s236 = ssub.s32 %s16, 1
        // Predicated region
        $region13: #{trans_conv_forward.1} parent=11 // pred_check
          %p237 = pneg %p131
        $region14: #{trans_conv_forward.1} parent=11 // pred_check_branch
          %239 = sbr.rel (%p237) target = $region16
        $region15: #{trans_conv_forward.1} parent=11 // pred_region
          _
        $region16: #{trans_conv_forward.1} parent=11 // pred_fallthru
          _
        // Predicated region
        $region17: #{trans_conv_forward.1} parent=11 // pred_check
          %p240 = pneg %p152
        $region18: #{trans_conv_forward.1} parent=11 // pred_check_branch
          %242 = sbr.rel (%p240) target = $region20
        $region19: #{trans_conv_forward.1} parent=11 // pred_region
          _
        $region20: #{trans_conv_forward.1} parent=11 // pred_fallthru
          _
        // Predicated region
        $region21: #{trans_conv_forward.1} parent=11 // pred_check
          %p243 = pneg %p173
        $region22: #{trans_conv_forward.1} parent=11 // pred_check_branch
          %245 = sbr.rel (%p243) target = $region24
        $region23: #{trans_conv_forward.1} parent=11 // pred_region
          _
        $region24: #{trans_conv_forward.1} parent=11 // pred_fallthru
          _
        // Predicated region
        $region25: #{trans_conv_forward.1} parent=11 // pred_check
          %p246 = pneg %p194
        $region26: #{trans_conv_forward.1} parent=11 // pred_check_branch
          %248 = sbr.rel (%p246) target = $region28
        $region27: #{trans_conv_forward.1} parent=11 // pred_region
          _
        $region28: #{trans_conv_forward.1} parent=11 // pred_fallthru
          _
      $region12: #{trans_conv_forward.1} parent=5 // pred_fallthru
        _
      %p249 = scmp.lt.s32.totalorder %s16, 2
      // Predicated region
      $region29: #{trans_conv_forward.1} parent=5 // pred_check
        %p250 = pneg %p249
      $region30: #{trans_conv_forward.1} parent=5 // pred_check_branch
        %252 = sbr.rel (%p250) target = $region32
      $region31: #{trans_conv_forward.1} parent=5 // pred_region
        // Predicated region
        $region33: #{trans_conv_forward.1} parent=31 // pred_check
          %p253 = pneg %p50
        $region34: #{trans_conv_forward.1} parent=31 // pred_check_branch
          %255 = sbr.rel (%p253) target = $region36
        $region35: #{trans_conv_forward.1} parent=31 // pred_region
          %s256 = smul.u32 32, %s24
          %p257 = scmp.lt.s32.totalorder %s23, 1
          %s258 = scalar_select %p257, %s23, 1
          %p259 = scmp.lt.s32.totalorder %s256, 31
          %s260 = scalar_select %p259, %s256, 31
          %s261 = smul.addr %s258, 32
          %s262 = sadd.s32 %s260, %s261
          %s263 = smul.addr %s262, 4
          %s264 = scalar_lea.vmem %s0, %s263
          %s265 = smul.u32 32, %s24
        $region36: #{trans_conv_forward.1} parent=31 // pred_fallthru
          _
        // Predicated region
        $region37: #{trans_conv_forward.1} parent=31 // pred_check
          %p266 = pneg %p78
        $region38: #{trans_conv_forward.1} parent=31 // pred_check_branch
          %268 = sbr.rel (%p266) target = $region40
        $region39: #{trans_conv_forward.1} parent=31 // pred_region
          %s269 = smul.u32 32, %s24
          %p270 = scmp.lt.s32.totalorder %s23, 1
          %s271 = scalar_select %p270, %s23, 1
          %p272 = scmp.lt.s32.totalorder %s269, 31
          %s273 = scalar_select %p272, %s269, 31
          %s274 = smul.addr %s273, 2
          %s275 = smul.addr %s271, 64
          %s276 = sadd.s32 %s274, %s275
          %s277 = smul.addr %s276, 4
          %s278 = scalar_lea.vmem %s1, %s277
          %s279 = smul.u32 32, %s24
        $region40: #{trans_conv_forward.1} parent=31 // pred_fallthru
          _
        // Predicated region
        $region41: #{trans_conv_forward.1} parent=31 // pred_check
          %p280 = pneg %p104
        $region42: #{trans_conv_forward.1} parent=31 // pred_check_branch
          %282 = sbr.rel (%p280) target = $region44
        $region43: #{trans_conv_forward.1} parent=31 // pred_region
          %p283 = scmp.lt.s32.totalorder %s23, 1
          %s284 = scalar_select %p283, %s23, 1
          %s285 = scalar_lea.vmem %s2, %s284
        $region44: #{trans_conv_forward.1} parent=31 // pred_fallthru
          _
      $region32: #{trans_conv_forward.1} parent=5 // pred_fallthru
        _
      %p286 = scmp.le.s32.totalorder 1, %s16
      %p287 = scmp.lt.s32.totalorder %s16, 3
      %p288 = pnand %p286, %p287
      %p289 = pneg %p288
      // Predicated region
      $region45: #{trans_conv_forward.1} parent=5 // pred_check
        _
      $region46: #{trans_conv_forward.1} parent=5 // pred_check_branch
        %291 = sbr.rel (%p288) target = $region48
      $region47: #{trans_conv_forward.1} parent=5 // pred_region
        %s292 = ssub.s32 %s16, 1
        %s293 = smul.u32 32, %s26
        %p294 = scmp.lt.s32.totalorder %s25, 1
        %s295 = scalar_select %p294, %s25, 1
        %p296 = scmp.lt.s32.totalorder %s293, 31
        %s297 = scalar_select %p296, %s293, 31
        %s298 = smul.addr %s295, 32
        %s299 = sadd.s32 %s297, %s298
        %s300 = smul.addr %s299, 4
        %s301 = scalar_lea.vmem %s0, %s300
        %p302 = pneg %p56
        %p303 = pneg %p53
        %s304 = smul.u32 32, %s26
        %p305 = scmp.lt.s32.totalorder %s25, 1
        %s306 = scalar_select %p305, %s25, 1
        %p307 = scmp.lt.s32.totalorder %s304, 31
        %s308 = scalar_select %p307, %s304, 31
        %s309 = smul.addr %s308, 2
        %s310 = smul.addr %s306, 64
        %s311 = sadd.s32 %s309, %s310
        %s312 = smul.addr %s311, 4
        %s313 = scalar_lea.vmem %s1, %s312
        %p314 = pneg %p84
        %p315 = pneg %p81
        %p316 = scmp.lt.s32.totalorder %s25, 1
        %s317 = scalar_select %p316, %s25, 1
        %s318 = scalar_lea.vmem %s2, %s317
        %p319 = pneg %p110
        %p320 = pneg %p107
        %p321 = pneg %p131
        %p322 = pneg %p128
        %p323 = pneg %p152
        %p324 = pneg %p149
        %p325 = pneg %p173
        %p326 = pneg %p170
        %p327 = pneg %p194
        %p328 = pneg %p191
        %p329 = pneg %p222
        %p330 = pneg %p219
        %s331 = sand.u32 %s209, 1
        %s332 = scalar_lea.sflag [#allocation3], %s331
        %s333 = sand.u32 %s209, 1
        %s334 = smul.addr %s333, 256
        %s335 = scalar_lea.vmem [#allocation2], %s334
        %s336 = smul.u32 32, %s26
        %p337 = scmp.lt.s32.totalorder %s25, 1
        %s338 = scalar_select %p337, %s25, 1
        %p339 = scmp.lt.s32.totalorder %s336, 31
        %s340 = scalar_select %p339, %s336, 31
        %s341 = smul.addr %s338, 32
        %s342 = sadd.s32 %s340, %s341
        %s343 = smul.addr %s342, 4
        %s344 = scalar_lea.vmem %s0, %s343
        %s345 = smul.u32 32, %s26
        %s346 = smul.u32 32, %s26
        %p347 = scmp.lt.s32.totalorder %s25, 1
        %s348 = scalar_select %p347, %s25, 1
        %p349 = scmp.lt.s32.totalorder %s346, 31
        %s350 = scalar_select %p349, %s346, 31
        %s351 = smul.addr %s350, 2
        %s352 = smul.addr %s348, 64
        %s353 = sadd.s32 %s351, %s352
        %s354 = smul.addr %s353, 4
        %s355 = scalar_lea.vmem %s1, %s354
        %s356 = smul.u32 32, %s26
        %p357 = scmp.lt.s32.totalorder %s25, 1
        %s358 = scalar_select %p357, %s25, 1
        %s359 = scalar_lea.vmem %s2, %s358
        %s360 = smul.u32 32, %s26
        %v362 = vld [vmem:[%s344] sm:$0xf]
        %v363 = vld [vmem:[%s344 + $0x4] sm:$0xf]
        %v364 = vld [vmem:[%s344 + $0x8] sm:$0xf]
        %v365 = vld [vmem:[%s344 + $0xc] sm:$0xf]
        %v366 = vld [vmem:[%s344 + $0x10] sm:$0xf]
        %v367 = vld [vmem:[%s344 + $0x14] sm:$0xf]
        %v368 = vld [vmem:[%s344 + $0x18] sm:$0xf]
        %v369 = vld [vmem:[%s344 + $0x1c] sm:$0xf]
        %v370 = vld [vmem:[%s344 + $0x20] sm:$0xf]
        %v371 = vld [vmem:[%s344 + $0x24] sm:$0xf]
        %v372 = vld [vmem:[%s344 + $0x28] sm:$0xf]
        %v373 = vld [vmem:[%s344 + $0x2c] sm:$0xf]
        %v374 = vld [vmem:[%s344 + $0x30] sm:$0xf]
        %v375 = vld [vmem:[%s344 + $0x34] sm:$0xf]
        %v376 = vld [vmem:[%s344 + $0x38] sm:$0xf]
        %v377 = vld [vmem:[%s344 + $0x3c] sm:$0xf]
        %v378 = vld [vmem:[%s344 + $0x40] sm:$0xf]
        %v379 = vld [vmem:[%s344 + $0x44] sm:$0xf]
        %v380 = vld [vmem:[%s344 + $0x48] sm:$0xf]
        %v381 = vld [vmem:[%s344 + $0x4c] sm:$0xf]
        %v382 = vld [vmem:[%s344 + $0x50] sm:$0xf]
        %v383 = vld [vmem:[%s344 + $0x54] sm:$0xf]
        %v384 = vld [vmem:[%s344 + $0x58] sm:$0xf]
        %v385 = vld [vmem:[%s344 + $0x5c] sm:$0xf]
        %v386 = vld [vmem:[%s344 + $0x60] sm:$0xf]
        %v387 = vld [vmem:[%s344 + $0x64] sm:$0xf]
        %v388 = vld [vmem:[%s344 + $0x68] sm:$0xf]
        %v389 = vld [vmem:[%s344 + $0x6c] sm:$0xf]
        %v390 = vld [vmem:[%s344 + $0x70] sm:$0xf]
        %v391 = vld [vmem:[%s344 + $0x74] sm:$0xf]
        %v392 = vld [vmem:[%s344 + $0x78] sm:$0xf]
        %v393 = vld [vmem:[%s344 + $0x7c] sm:$0xf]
        %v394 = vld [vmem:[%s3] sm:$0xf]
        %v395 = vld [vmem:[%s3 + $0x4] sm:$0xf]
        %v396 = vld [vmem:[%s3 + $0x8] sm:$0xf]
        %v397 = vld [vmem:[%s3 + $0xc] sm:$0xf]
        %v398 = vld [vmem:[%s3 + $0x10] sm:$0xf]
        %v399 = vld [vmem:[%s3 + $0x14] sm:$0xf]
        %v400 = vld [vmem:[%s3 + $0x18] sm:$0xf]
        %v401 = vld [vmem:[%s3 + $0x1c] sm:$0xf]
        %v402 = vld [vmem:[%s4] sm:$0x1]
        %v404 = vlaneseq
        %v405 = vshrl.u32 %v404, 7
        %v406 = vsub.s32 0, %v405
        %v407 = vrot.slane %v402, %v406
        %v441 = vunpack.c.l.b16 %v362
        %v442 = vunpack.c.l.b16 %v363
        %v443 = vunpack.c.l.b16 %v364
        %v444 = vunpack.c.l.b16 %v365
        %v445 = vunpack.c.l.b16 %v366
        %v446 = vunpack.c.l.b16 %v367
        %v447 = vunpack.c.l.b16 %v368
        %v448 = vunpack.c.l.b16 %v369
        %v449 = vunpack.c.l.b16 %v370
        %v450 = vunpack.c.l.b16 %v371
        %v451 = vunpack.c.l.b16 %v372
        %v452 = vunpack.c.l.b16 %v373
        %v453 = vunpack.c.l.b16 %v374
        %v454 = vunpack.c.l.b16 %v375
        %v455 = vunpack.c.l.b16 %v376
        %v456 = vunpack.c.l.b16 %v377
        %v457 = vunpack.c.l.b16 %v378
        %v458 = vunpack.c.l.b16 %v379
        %v459 = vunpack.c.l.b16 %v380
        %v460 = vunpack.c.l.b16 %v381
        %v461 = vunpack.c.l.b16 %v382
        %v462 = vunpack.c.l.b16 %v383
        %v463 = vunpack.c.l.b16 %v384
        %v464 = vunpack.c.l.b16 %v385
        %v465 = vunpack.c.l.b16 %v386
        %v466 = vunpack.c.l.b16 %v387
        %v467 = vunpack.c.l.b16 %v388
        %v468 = vunpack.c.l.b16 %v389
        %v469 = vunpack.c.l.b16 %v390
        %v470 = vunpack.c.l.b16 %v391
        %v471 = vunpack.c.l.b16 %v392
        %v472 = vunpack.c.l.b16 %v393
        %v473 = vpack.c.b16 %v442, %v441
        %v474 = vpack.c.b16 %v444, %v443
        %v475 = vpack.c.b16 %v446, %v445
        %v476 = vpack.c.b16 %v448, %v447
        %v477 = vpack.c.b16 %v450, %v449
        %v478 = vpack.c.b16 %v452, %v451
        %v479 = vpack.c.b16 %v454, %v453
        %v480 = vpack.c.b16 %v456, %v455
        %v481 = vpack.c.b16 %v458, %v457
        %v482 = vpack.c.b16 %v460, %v459
        %v483 = vpack.c.b16 %v462, %v461
        %v484 = vpack.c.b16 %v464, %v463
        %v485 = vpack.c.b16 %v466, %v465
        %v486 = vpack.c.b16 %v468, %v467
        %v487 = vpack.c.b16 %v470, %v469
        %v488 = vpack.c.b16 %v472, %v471
        %v497 = vunpack.c.l.b16 %v394
        %v498 = vunpack.c.l.b16 %v395
        %v499 = vunpack.c.l.b16 %v396
        %v500 = vunpack.c.l.b16 %v397
        %v501 = vunpack.c.l.b16 %v398
        %v502 = vunpack.c.l.b16 %v399
        %v503 = vunpack.c.l.b16 %v400
        %v504 = vunpack.c.l.b16 %v401
        %v505 = vpack.c.b16 %v498, %v497
        %v506 = vpack.c.b16 %v500, %v499
        %v507 = vpack.c.b16 %v502, %v501
        %v508 = vpack.c.b16 %v504, %v503
        %vm513 = vcmask 523264
        %v515 = vsel %vm513, %v473, 0
        %v518 = vsel %vm513, %v474, 0
        %v521 = vsel %vm513, %v475, 0
        %v524 = vsel %vm513, %v476, 0
        %v527 = vsel %vm513, %v477, 0
        %v530 = vsel %vm513, %v478, 0
        %v533 = vsel %vm513, %v479, 0
        %v536 = vsel %vm513, %v480, 0
        %v539 = vsel %vm513, %v481, 0
        %v542 = vsel %vm513, %v482, 0
        %v545 = vsel %vm513, %v483, 0
        %v548 = vsel %vm513, %v484, 0
        %v551 = vsel %vm513, %v485, 0
        %v554 = vsel %vm513, %v486, 0
        %v557 = vsel %vm513, %v487, 0
        %v560 = vsel %vm513, %v488, 0
        %562 = vmatprep.subr.bf16.mxu0 0
        %563 = vmatpush1.bf16.msra.mxu0 %v505
        %564 = vmatprep.subr.bf16.mxu0 0
        %565 = vmatpush1.bf16.msra.mxu0 %v506
        %566 = vmatprep.subr.bf16.mxu0 0
        %567 = vmatpush1.bf16.msra.mxu0 %v507
        %568 = vmatprep.subr.bf16.mxu0 0
        %569 = vmatpush1.bf16.msra.mxu0 %v508
        %570 = vmatprep.subr.bf16.mxu0 0
        %571 = vmatpush1.bf16.msra.mxu0 0
        %572 = vmatprep.subr.bf16.mxu0 0
        %573 = vmatpush1.bf16.msra.mxu0 0
        %574 = vmatprep.subr.bf16.mxu0 0
        %575 = vmatpush1.bf16.msra.mxu0 0
        %576 = vmatprep.subr.bf16.mxu0 0
        %577 = vmatpush1.bf16.msra.mxu0 0
        %578 = vmatprep.subr.bf16.mxu0 0
        %579 = vmatpush1.bf16.msra.mxu0 0
        %580 = vmatprep.subr.bf16.mxu0 0
        %581 = vmatpush1.bf16.msra.mxu0 0
        %582 = vmatprep.subr.bf16.mxu0 0
        %583 = vmatpush1.bf16.msra.mxu0 0
        %584 = vmatprep.subr.bf16.mxu0 0
        %585 = vmatpush1.bf16.msra.mxu0 0
        %586 = vmatprep.subr.bf16.mxu0 0
        %587 = vmatpush1.bf16.msra.mxu0 0
        %588 = vmatprep.subr.bf16.mxu0 0
        %589 = vmatpush1.bf16.msra.mxu0 0
        %590 = vmatprep.subr.bf16.mxu0 0
        %591 = vmatpush1.bf16.msra.mxu0 0
        %592 = vmatprep.subr.bf16.mxu0 0
        %593 = vmatpush1.bf16.msra.mxu0 0
        %594 = vmatprep.mubr.bf16.mxu0 0
        %595 = vmatmul.mubr.bf16.gmra.mrb[0].mxu0 %v515
        %v596 = vpop.f32.mrb[0].mxu0
        %v597 = vadd.f32 %v407, %v596
        %v598 = vpop.f32.mrb[0].mxu0
        %v599 = vpop.f32.mrb[0].mxu0
        %v600 = vadd.f32 %v407, %v599
        %v601 = vpop.f32.mrb[0].mxu0
        %602 = vmatprep.mubr.bf16.mxu0 0
        %603 = vmatmul.mubr.bf16.gmra.mrb[0].mxu0 %v518
        %v604 = vpop.f32.mrb[0].mxu0
        %v605 = vadd.f32 %v407, %v604
        %v606 = vpop.f32.mrb[0].mxu0
        %v607 = vpop.f32.mrb[0].mxu0
        %v608 = vadd.f32 %v407, %v607
        %v609 = vpop.f32.mrb[0].mxu0
        %610 = vmatprep.mubr.bf16.mxu0 0
        %611 = vmatmul.mubr.bf16.gmra.mrb[0].mxu0 %v521
        %v612 = vpop.f32.mrb[0].mxu0
        %v613 = vadd.f32 %v407, %v612
        %v614 = vpop.f32.mrb[0].mxu0
        %v615 = vpop.f32.mrb[0].mxu0
        %v616 = vadd.f32 %v407, %v615
        %v617 = vpop.f32.mrb[0].mxu0
        %618 = vmatprep.mubr.bf16.mxu0 0
        %619 = vmatmul.mubr.bf16.gmra.mrb[0].mxu0 %v524
        %v620 = vpop.f32.mrb[0].mxu0
        %v621 = vadd.f32 %v407, %v620
        %v622 = vpop.f32.mrb[0].mxu0
        %v623 = vpop.f32.mrb[0].mxu0
        %v624 = vadd.f32 %v407, %v623
        %v625 = vpop.f32.mrb[0].mxu0
        %626 = vmatprep.mubr.bf16.mxu0 0
        %627 = vmatmul.mubr.bf16.gmra.mrb[0].mxu0 %v527
        %v628 = vpop.f32.mrb[0].mxu0
        %v629 = vadd.f32 %v407, %v628
        %v630 = vpop.f32.mrb[0].mxu0
        %v631 = vpop.f32.mrb[0].mxu0
        %v632 = vadd.f32 %v407, %v631
        %v633 = vpop.f32.mrb[0].mxu0
        %634 = vmatprep.mubr.bf16.mxu0 0
        %635 = vmatmul.mubr.bf16.gmra.mrb[0].mxu0 %v530
        %v636 = vpop.f32.mrb[0].mxu0
        %v637 = vadd.f32 %v407, %v636
        %v638 = vpop.f32.mrb[0].mxu0
        %v639 = vpop.f32.mrb[0].mxu0
        %v640 = vadd.f32 %v407, %v639
        %v641 = vpop.f32.mrb[0].mxu0
        %642 = vmatprep.mubr.bf16.mxu0 0
        %643 = vmatmul.mubr.bf16.gmra.mrb[0].mxu0 %v533
        %v644 = vpop.f32.mrb[0].mxu0
        %v645 = vadd.f32 %v407, %v644
        %v646 = vpop.f32.mrb[0].mxu0
        %v647 = vpop.f32.mrb[0].mxu0
        %v648 = vadd.f32 %v407, %v647
        %v649 = vpop.f32.mrb[0].mxu0
        %650 = vmatprep.mubr.bf16.mxu0 0
        %651 = vmatmul.mubr.bf16.gmra.mrb[0].mxu0 %v536
        %v652 = vpop.f32.mrb[0].mxu0
        %v653 = vadd.f32 %v407, %v652
        %v654 = vpop.f32.mrb[0].mxu0
        %v655 = vpop.f32.mrb[0].mxu0
        %v656 = vadd.f32 %v407, %v655
        %v657 = vpop.f32.mrb[0].mxu0
        %658 = vmatprep.mubr.bf16.mxu0 0
        %659 = vmatmul.mubr.bf16.gmra.mrb[0].mxu0 %v539
        %v660 = vpop.f32.mrb[0].mxu0
        %v661 = vadd.f32 %v407, %v660
        %v662 = vpop.f32.mrb[0].mxu0
        %v663 = vpop.f32.mrb[0].mxu0
        %v664 = vadd.f32 %v407, %v663
        %v665 = vpop.f32.mrb[0].mxu0
        %666 = vmatprep.mubr.bf16.mxu0 0
        %667 = vmatmul.mubr.bf16.gmra.mrb[0].mxu0 %v542
        %v668 = vpop.f32.mrb[0].mxu0
        %v669 = vadd.f32 %v407, %v668
        %v670 = vpop.f32.mrb[0].mxu0
        %v671 = vpop.f32.mrb[0].mxu0
        %v672 = vadd.f32 %v407, %v671
        %v673 = vpop.f32.mrb[0].mxu0
        %674 = vmatprep.mubr.bf16.mxu0 0
        %675 = vmatmul.mubr.bf16.gmra.mrb[0].mxu0 %v545
        %v676 = vpop.f32.mrb[0].mxu0
        %v677 = vadd.f32 %v407, %v676
        %v678 = vpop.f32.mrb[0].mxu0
        %v679 = vpop.f32.mrb[0].mxu0
        %v680 = vadd.f32 %v407, %v679
        %v681 = vpop.f32.mrb[0].mxu0
        %682 = vmatprep.mubr.bf16.mxu0 0
        %683 = vmatmul.mubr.bf16.gmra.mrb[0].mxu0 %v548
        %v684 = vpop.f32.mrb[0].mxu0
        %v685 = vadd.f32 %v407, %v684
        %v686 = vpop.f32.mrb[0].mxu0
        %v687 = vpop.f32.mrb[0].mxu0
        %v688 = vadd.f32 %v407, %v687
        %v689 = vpop.f32.mrb[0].mxu0
        %690 = vmatprep.mubr.bf16.mxu0 0
        %691 = vmatmul.mubr.bf16.gmra.mrb[0].mxu0 %v551
        %v692 = vpop.f32.mrb[0].mxu0
        %v693 = vadd.f32 %v407, %v692
        %v694 = vpop.f32.mrb[0].mxu0
        %v695 = vpop.f32.mrb[0].mxu0
        %v696 = vadd.f32 %v407, %v695
        %v697 = vpop.f32.mrb[0].mxu0
        %698 = vmatprep.mubr.bf16.mxu0 0
        %699 = vmatmul.mubr.bf16.gmra.mrb[0].mxu0 %v554
        %v700 = vpop.f32.mrb[0].mxu0
        %v701 = vadd.f32 %v407, %v700
        %v702 = vpop.f32.mrb[0].mxu0
        %v703 = vpop.f32.mrb[0].mxu0
        %v704 = vadd.f32 %v407, %v703
        %v705 = vpop.f32.mrb[0].mxu0
        %706 = vmatprep.mubr.bf16.mxu0 0
        %707 = vmatmul.mubr.bf16.gmra.mrb[0].mxu0 %v557
        %v708 = vpop.f32.mrb[0].mxu0
        %v709 = vadd.f32 %v407, %v708
        %v710 = vpop.f32.mrb[0].mxu0
        %v711 = vpop.f32.mrb[0].mxu0
        %v712 = vadd.f32 %v407, %v711
        %v713 = vpop.f32.mrb[0].mxu0
        %714 = vmatprep.mubr.bf16.mxu0 0
        %715 = vmatmul.mubr.bf16.gmra.mrb[0].mxu0 %v560
        %v716 = vpop.f32.mrb[0].mxu0
        %v717 = vadd.f32 %v407, %v716
        %v718 = vpop.f32.mrb[0].mxu0
        %v719 = vpop.f32.mrb[0].mxu0
        %v720 = vadd.f32 %v407, %v719
        %v721 = vpop.f32.mrb[0].mxu0
        %722 = vdwg.mxu0
        %v723 = vmax.f32 %v597, 0.0
        %v724 = vmax.f32 %v600, 0.0
        %v725 = vmax.f32 %v605, 0.0
        %v726 = vmax.f32 %v608, 0.0
        %v727 = vmax.f32 %v613, 0.0
        %v728 = vmax.f32 %v616, 0.0
        %v729 = vmax.f32 %v621, 0.0
        %v730 = vmax.f32 %v624, 0.0
        %v731 = vmax.f32 %v629, 0.0
        %v732 = vmax.f32 %v632, 0.0
        %v733 = vmax.f32 %v637, 0.0
        %v734 = vmax.f32 %v640, 0.0
        %v735 = vmax.f32 %v645, 0.0
        %v736 = vmax.f32 %v648, 0.0
        %v737 = vmax.f32 %v653, 0.0
        %v738 = vmax.f32 %v656, 0.0
        %v739 = vmax.f32 %v661, 0.0
        %v740 = vmax.f32 %v664, 0.0
        %v741 = vmax.f32 %v669, 0.0
        %v742 = vmax.f32 %v672, 0.0
        %v743 = vmax.f32 %v677, 0.0
        %v744 = vmax.f32 %v680, 0.0
        %v745 = vmax.f32 %v685, 0.0
        %v746 = vmax.f32 %v688, 0.0
        %v747 = vmax.f32 %v693, 0.0
        %v748 = vmax.f32 %v696, 0.0
        %v749 = vmax.f32 %v701, 0.0
        %v750 = vmax.f32 %v704, 0.0
        %v751 = vmax.f32 %v709, 0.0
        %v752 = vmax.f32 %v712, 0.0
        %v753 = vmax.f32 %v717, 0.0
        %v754 = vmax.f32 %v720, 0.0
        %v755 = vpack.c.bf16 %v724, %v723
        %v756 = vpack.c.bf16 %v726, %v725
        %v757 = vpack.c.bf16 %v728, %v727
        %v758 = vpack.c.bf16 %v730, %v729
        %v759 = vpack.c.bf16 %v732, %v731
        %v760 = vpack.c.bf16 %v734, %v733
        %v761 = vpack.c.bf16 %v736, %v735
        %v762 = vpack.c.bf16 %v738, %v737
        %v763 = vpack.c.bf16 %v740, %v739
        %v764 = vpack.c.bf16 %v742, %v741
        %v765 = vpack.c.bf16 %v744, %v743
        %v766 = vpack.c.bf16 %v746, %v745
        %v767 = vpack.c.bf16 %v748, %v747
        %v768 = vpack.c.bf16 %v750, %v749
        %v769 = vpack.c.bf16 %v752, %v751
        %v770 = vpack.c.bf16 %v754, %v753
        %v771 = vld [vmem:[%s5] sm:$0xf]
        %v772 = vld [vmem:[%s5 + $0x4] sm:$0xf]
        %v773 = vld [vmem:[%s5 + $0x8] sm:$0xf]
        %v774 = vld [vmem:[%s5 + $0xc] sm:$0xf]
        %v775 = vld [vmem:[%s5 + $0x10] sm:$0xf]
        %v776 = vld [vmem:[%s5 + $0x14] sm:$0xf]
        %v777 = vld [vmem:[%s5 + $0x18] sm:$0xf]
        %v778 = vld [vmem:[%s5 + $0x1c] sm:$0xf]
        %v779 = vld [vmem:[%s355] sm:$0xff]
        %v780 = vld [vmem:[%s355 + $0x8] sm:$0xff]
        %v781 = vld [vmem:[%s355 + $0x10] sm:$0xff]
        %v782 = vld [vmem:[%s355 + $0x18] sm:$0xff]
        %v783 = vld [vmem:[%s355 + $0x20] sm:$0xff]
        %v784 = vld [vmem:[%s355 + $0x28] sm:$0xff]
        %v785 = vld [vmem:[%s355 + $0x30] sm:$0xff]
        %v786 = vld [vmem:[%s355 + $0x38] sm:$0xff]
        %v787 = vld [vmem:[%s355 + $0x40] sm:$0xff]
        %v788 = vld [vmem:[%s355 + $0x48] sm:$0xff]
        %v789 = vld [vmem:[%s355 + $0x50] sm:$0xff]
        %v790 = vld [vmem:[%s355 + $0x58] sm:$0xff]
        %v791 = vld [vmem:[%s355 + $0x60] sm:$0xff]
        %v792 = vld [vmem:[%s355 + $0x68] sm:$0xff]
        %v793 = vld [vmem:[%s355 + $0x70] sm:$0xff]
        %v794 = vld [vmem:[%s355 + $0x78] sm:$0xff]
        %v795 = vld [vmem:[%s355 + $0x80] sm:$0xff]
        %v796 = vld [vmem:[%s355 + $0x88] sm:$0xff]
        %v797 = vld [vmem:[%s355 + $0x90] sm:$0xff]
        %v798 = vld [vmem:[%s355 + $0x98] sm:$0xff]
        %v799 = vld [vmem:[%s355 + $0xa0] sm:$0xff]
        %v800 = vld [vmem:[%s355 + $0xa8] sm:$0xff]
        %v801 = vld [vmem:[%s355 + $0xb0] sm:$0xff]
        %v802 = vld [vmem:[%s355 + $0xb8] sm:$0xff]
        %v803 = vld [vmem:[%s355 + $0xc0] sm:$0xff]
        %v804 = vld [vmem:[%s355 + $0xc8] sm:$0xff]
        %v805 = vld [vmem:[%s355 + $0xd0] sm:$0xff]
        %v806 = vld [vmem:[%s355 + $0xd8] sm:$0xff]
        %v807 = vld [vmem:[%s355 + $0xe0] sm:$0xff]
        %v808 = vld [vmem:[%s355 + $0xe8] sm:$0xff]
        %v809 = vld [vmem:[%s355 + $0xf0] sm:$0xff]
        %v810 = vld [vmem:[%s355 + $0xf8] sm:$0xff]
        %v811 = vld [vmem:[%s6] sm:$0xf]
        %v812 = vld [vmem:[%s6 + $0x4] sm:$0xf]
        %v813 = vld [vmem:[%s6 + $0x8] sm:$0xf]
        %v814 = vld [vmem:[%s6 + $0xc] sm:$0xf]
        %v815 = vld [vmem:[%s6 + $0x10] sm:$0xf]
        %v816 = vld [vmem:[%s6 + $0x14] sm:$0xf]
        %v817 = vld [vmem:[%s6 + $0x18] sm:$0xf]
        %v818 = vld [vmem:[%s6 + $0x1c] sm:$0xf]
        %v819 = vld [vmem:[%s6 + $0x20] sm:$0xf]
        %v820 = vld [vmem:[%s6 + $0x24] sm:$0xf]
        %v821 = vld [vmem:[%s6 + $0x28] sm:$0xf]
        %v822 = vld [vmem:[%s6 + $0x2c] sm:$0xf]
        %v823 = vld [vmem:[%s6 + $0x30] sm:$0xf]
        %v824 = vld [vmem:[%s6 + $0x34] sm:$0xf]
        %v825 = vld [vmem:[%s6 + $0x38] sm:$0xf]
        %v826 = vld [vmem:[%s6 + $0x3c] sm:$0xf]
        %v827 = vld [vmem:[%s6 + $0x40] sm:$0xf]
        %v828 = vld [vmem:[%s6 + $0x44] sm:$0xf]
        %v829 = vld [vmem:[%s6 + $0x48] sm:$0xf]
        %v830 = vld [vmem:[%s6 + $0x4c] sm:$0xf]
        %v831 = vld [vmem:[%s6 + $0x50] sm:$0xf]
        %v832 = vld [vmem:[%s6 + $0x54] sm:$0xf]
        %v833 = vld [vmem:[%s6 + $0x58] sm:$0xf]
        %v834 = vld [vmem:[%s6 + $0x5c] sm:$0xf]
        %v867 = vunpack.c.l.b16 %v779
        %v868 = vunpack.c.h.b16 %v779
        %v869 = vunpack.c.l.b16 %v780
        %v870 = vunpack.c.h.b16 %v780
        %v871 = vunpack.c.l.b16 %v781
        %v872 = vunpack.c.h.b16 %v781
        %v873 = vunpack.c.l.b16 %v782
        %v874 = vunpack.c.h.b16 %v782
        %v875 = vunpack.c.l.b16 %v783
        %v876 = vunpack.c.h.b16 %v783
        %v877 = vunpack.c.l.b16 %v784
        %v878 = vunpack.c.h.b16 %v784
        %v879 = vunpack.c.l.b16 %v785
        %v880 = vunpack.c.h.b16 %v785
        %v881 = vunpack.c.l.b16 %v786
        %v882 = vunpack.c.h.b16 %v786
        %v883 = vunpack.c.l.b16 %v787
        %v884 = vunpack.c.h.b16 %v787
        %v885 = vunpack.c.l.b16 %v788
        %v886 = vunpack.c.h.b16 %v788
        %v887 = vunpack.c.l.b16 %v789
        %v888 = vunpack.c.h.b16 %v789
        %v889 = vunpack.c.l.b16 %v790
        %v890 = vunpack.c.h.b16 %v790
        %v891 = vunpack.c.l.b16 %v791
        %v892 = vunpack.c.h.b16 %v791
        %v893 = vunpack.c.l.b16 %v792
        %v894 = vunpack.c.h.b16 %v792
        %v895 = vunpack.c.l.b16 %v793
        %v896 = vunpack.c.h.b16 %v793
        %v897 = vunpack.c.l.b16 %v794
        %v898 = vunpack.c.h.b16 %v794
        %v899 = vunpack.c.l.b16 %v795
        %v900 = vunpack.c.h.b16 %v795
        %v901 = vunpack.c.l.b16 %v796
        %v902 = vunpack.c.h.b16 %v796
        %v903 = vunpack.c.l.b16 %v797
        %v904 = vunpack.c.h.b16 %v797
        %v905 = vunpack.c.l.b16 %v798
        %v906 = vunpack.c.h.b16 %v798
        %v907 = vunpack.c.l.b16 %v799
        %v908 = vunpack.c.h.b16 %v799
        %v909 = vunpack.c.l.b16 %v800
        %v910 = vunpack.c.h.b16 %v800
        %v911 = vunpack.c.l.b16 %v801
        %v912 = vunpack.c.h.b16 %v801
        %v913 = vunpack.c.l.b16 %v802
        %v914 = vunpack.c.h.b16 %v802
        %v915 = vunpack.c.l.b16 %v803
        %v916 = vunpack.c.h.b16 %v803
        %v917 = vunpack.c.l.b16 %v804
        %v918 = vunpack.c.h.b16 %v804
        %v919 = vunpack.c.l.b16 %v805
        %v920 = vunpack.c.h.b16 %v805
        %v921 = vunpack.c.l.b16 %v806
        %v922 = vunpack.c.h.b16 %v806
        %v923 = vunpack.c.l.b16 %v807
        %v924 = vunpack.c.h.b16 %v807
        %v925 = vunpack.c.l.b16 %v808
        %v926 = vunpack.c.h.b16 %v808
        %v927 = vunpack.c.l.b16 %v809
        %v928 = vunpack.c.h.b16 %v809
        %v929 = vunpack.c.l.b16 %v810
        %v930 = vunpack.c.h.b16 %v810
        %v931 = vpack.c.b16 %v869, %v867
        %v932 = vpack.c.b16 %v870, %v868
        %v933 = vpack.c.b16 %v873, %v871
        %v934 = vpack.c.b16 %v874, %v872
        %v935 = vpack.c.b16 %v877, %v875
        %v936 = vpack.c.b16 %v878, %v876
        %v937 = vpack.c.b16 %v881, %v879
        %v938 = vpack.c.b16 %v882, %v880
        %v939 = vpack.c.b16 %v885, %v883
        %v940 = vpack.c.b16 %v886, %v884
        %v941 = vpack.c.b16 %v889, %v887
        %v942 = vpack.c.b16 %v890, %v888
        %v943 = vpack.c.b16 %v893, %v891
        %v944 = vpack.c.b16 %v894, %v892
        %v945 = vpack.c.b16 %v897, %v895
        %v946 = vpack.c.b16 %v898, %v896
        %v947 = vpack.c.b16 %v901, %v899
        %v948 = vpack.c.b16 %v902, %v900
        %v949 = vpack.c.b16 %v905, %v903
        %v950 = vpack.c.b16 %v906, %v904
        %v951 = vpack.c.b16 %v909, %v907
        %v952 = vpack.c.b16 %v910, %v908
        %v953 = vpack.c.b16 %v913, %v911
        %v954 = vpack.c.b16 %v914, %v912
        %v955 = vpack.c.b16 %v917, %v915
        %v956 = vpack.c.b16 %v918, %v916
        %v957 = vpack.c.b16 %v921, %v919
        %v958 = vpack.c.b16 %v922, %v920
        %v959 = vpack.c.b16 %v925, %v923
        %v960 = vpack.c.b16 %v926, %v924
        %v961 = vpack.c.b16 %v929, %v927
        %v962 = vpack.c.b16 %v930, %v928
        %v1003 = vunpack.c.l.b16 %v811
        %v1004 = vunpack.c.l.b16 %v812
        %v1005 = vunpack.c.l.b16 %v813
        %v1006 = vunpack.c.l.b16 %v814
        %v1007 = vunpack.c.l.b16 %v815
        %v1008 = vunpack.c.l.b16 %v816
        %v1009 = vunpack.c.l.b16 %v817
        %v1010 = vunpack.c.l.b16 %v818
        %v1011 = vunpack.c.l.b16 %v819
        %v1012 = vunpack.c.l.b16 %v820
        %v1013 = vunpack.c.l.b16 %v821
        %v1014 = vunpack.c.l.b16 %v822
        %v1015 = vunpack.c.l.b16 %v823
        %v1016 = vunpack.c.l.b16 %v824
        %v1017 = vunpack.c.l.b16 %v825
        %v1018 = vunpack.c.l.b16 %v826
        %v1019 = vunpack.c.l.b16 %v827
        %v1020 = vunpack.c.l.b16 %v828
        %v1021 = vunpack.c.l.b16 %v829
        %v1022 = vunpack.c.l.b16 %v830
        %v1023 = vunpack.c.l.b16 %v831
        %v1024 = vunpack.c.l.b16 %v832
        %v1025 = vunpack.c.l.b16 %v833
        %v1026 = vunpack.c.l.b16 %v834
        %v1027 = vpack.c.b16 %v1004, %v1003
        %v1028 = vpack.c.b16 %v1006, %v1005
        %v1029 = vpack.c.b16 %v1008, %v1007
        %v1030 = vpack.c.b16 %v1010, %v1009
        %v1031 = vpack.c.b16 %v1012, %v1011
        %v1032 = vpack.c.b16 %v1014, %v1013
        %v1033 = vpack.c.b16 %v1016, %v1015
        %v1034 = vpack.c.b16 %v1018, %v1017
        %v1035 = vpack.c.b16 %v1020, %v1019
        %v1036 = vpack.c.b16 %v1022, %v1021
        %v1037 = vpack.c.b16 %v1024, %v1023
        %v1038 = vpack.c.b16 %v1026, %v1025
        %v1052 = vsel %vm513, %v932, 0
        %v1055 = vsel %vm513, %v934, 0
        %v1058 = vsel %vm513, %v936, 0
        %v1061 = vsel %vm513, %v938, 0
        %v1064 = vsel %vm513, %v940, 0
        %v1067 = vsel %vm513, %v942, 0
        %v1070 = vsel %vm513, %v944, 0
        %v1073 = vsel %vm513, %v946, 0
        %v1076 = vsel %vm513, %v948, 0
        %v1079 = vsel %vm513, %v950, 0
        %v1082 = vsel %vm513, %v952, 0
        %v1085 = vsel %vm513, %v954, 0
        %v1088 = vsel %vm513, %v956, 0
        %v1091 = vsel %vm513, %v958, 0
        %v1094 = vsel %vm513, %v960, 0
        %v1097 = vsel %vm513, %v962, 0
        %1099 = vmatprep.subr.bf16.mxu0 0
        %1100 = vmatpush1.bf16.msra.mxu0 %v1027
        %1101 = vmatprep.subr.bf16.mxu0 0
        %1102 = vmatpush1.bf16.msra.mxu0 %v1028
        %1103 = vmatprep.subr.bf16.mxu0 0
        %1104 = vmatpush1.bf16.msra.mxu0 %v1029
        %1105 = vmatprep.subr.bf16.mxu0 0
        %1106 = vmatpush1.bf16.msra.mxu0 %v1030
        %1107 = vmatprep.subr.bf16.mxu0 0
        %1108 = vmatpush1.bf16.msra.mxu0 %v1031
        %1109 = vmatprep.subr.bf16.mxu0 0
        %1110 = vmatpush1.bf16.msra.mxu0 %v1032
        %1111 = vmatprep.subr.bf16.mxu0 0
        %1112 = vmatpush1.bf16.msra.mxu0 %v1033
        %1113 = vmatprep.subr.bf16.mxu0 0
        %1114 = vmatpush1.bf16.msra.mxu0 %v1034
        %1115 = vmatprep.subr.bf16.mxu0 0
        %1116 = vmatpush1.bf16.msra.mxu0 %v1035
        %1117 = vmatprep.subr.bf16.mxu0 0
        %1118 = vmatpush1.bf16.msra.mxu0 %v1036
        %1119 = vmatprep.subr.bf16.mxu0 0
        %1120 = vmatpush1.bf16.msra.mxu0 %v1037
        %1121 = vmatprep.subr.bf16.mxu0 0
        %1122 = vmatpush1.bf16.msra.mxu0 %v1038
        %1123 = vmatprep.subr.bf16.mxu0 0
        %1124 = vmatpush1.bf16.msra.mxu0 0
        %1125 = vmatprep.subr.bf16.mxu0 0
        %1126 = vmatpush1.bf16.msra.mxu0 0
        %1127 = vmatprep.subr.bf16.mxu0 0
        %1128 = vmatpush1.bf16.msra.mxu0 0
        %1129 = vmatprep.subr.bf16.mxu0 0
        %1130 = vmatpush1.bf16.msra.mxu0 0
        %1131 = vmatprep.mubr.bf16.mxu0 %v1052
        %1132 = vmatmul.mubr.bf16.gmra.mrb[0].mxu0 %v931
        %v1133 = vpop.f32.mrb[0].mxu0
        %v1134 = vadd.f32 0.0, %v1133
        %v1135 = vpop.f32.mrb[0].mxu0
        %v1136 = vpop.f32.mrb[0].mxu0
        %v1137 = vadd.f32 0.0, %v1136
        %v1138 = vpop.f32.mrb[0].mxu0
        %1139 = vmatprep.mubr.bf16.mxu0 %v1055
        %1140 = vmatmul.mubr.bf16.gmra.mrb[0].mxu0 %v933
        %v1141 = vpop.f32.mrb[0].mxu0
        %v1142 = vadd.f32 0.0, %v1141
        %v1143 = vpop.f32.mrb[0].mxu0
        %v1144 = vpop.f32.mrb[0].mxu0
        %v1145 = vadd.f32 0.0, %v1144
        %v1146 = vpop.f32.mrb[0].mxu0
        %1147 = vmatprep.mubr.bf16.mxu0 %v1058
        %1148 = vmatmul.mubr.bf16.gmra.mrb[0].mxu0 %v935
        %v1149 = vpop.f32.mrb[0].mxu0
        %v1150 = vadd.f32 0.0, %v1149
        %v1151 = vpop.f32.mrb[0].mxu0
        %v1152 = vpop.f32.mrb[0].mxu0
        %v1153 = vadd.f32 0.0, %v1152
        %v1154 = vpop.f32.mrb[0].mxu0
        %1155 = vmatprep.mubr.bf16.mxu0 %v1061
        %1156 = vmatmul.mubr.bf16.gmra.mrb[0].mxu0 %v937
        %v1157 = vpop.f32.mrb[0].mxu0
        %v1158 = vadd.f32 0.0, %v1157
        %v1159 = vpop.f32.mrb[0].mxu0
        %v1160 = vpop.f32.mrb[0].mxu0
        %v1161 = vadd.f32 0.0, %v1160
        %v1162 = vpop.f32.mrb[0].mxu0
        %1163 = vmatprep.mubr.bf16.mxu0 %v1064
        %1164 = vmatmul.mubr.bf16.gmra.mrb[0].mxu0 %v939
        %v1165 = vpop.f32.mrb[0].mxu0
        %v1166 = vadd.f32 0.0, %v1165
        %v1167 = vpop.f32.mrb[0].mxu0
        %v1168 = vpop.f32.mrb[0].mxu0
        %v1169 = vadd.f32 0.0, %v1168
        %v1170 = vpop.f32.mrb[0].mxu0
        %1171 = vmatprep.mubr.bf16.mxu0 %v1067
        %1172 = vmatmul.mubr.bf16.gmra.mrb[0].mxu0 %v941
        %v1173 = vpop.f32.mrb[0].mxu0
        %v1174 = vadd.f32 0.0, %v1173
        %v1175 = vpop.f32.mrb[0].mxu0
        %v1176 = vpop.f32.mrb[0].mxu0
        %v1177 = vadd.f32 0.0, %v1176
        %v1178 = vpop.f32.mrb[0].mxu0
        %1179 = vmatprep.mubr.bf16.mxu0 %v1070
        %1180 = vmatmul.mubr.bf16.gmra.mrb[0].mxu0 %v943
        %v1181 = vpop.f32.mrb[0].mxu0
        %v1182 = vadd.f32 0.0, %v1181
        %v1183 = vpop.f32.mrb[0].mxu0
        %v1184 = vpop.f32.mrb[0].mxu0
        %v1185 = vadd.f32 0.0, %v1184
        %v1186 = vpop.f32.mrb[0].mxu0
        %1187 = vmatprep.mubr.bf16.mxu0 %v1073
        %1188 = vmatmul.mubr.bf16.gmra.mrb[0].mxu0 %v945
        %v1189 = vpop.f32.mrb[0].mxu0
        %v1190 = vadd.f32 0.0, %v1189
        %v1191 = vpop.f32.mrb[0].mxu0
        %v1192 = vpop.f32.mrb[0].mxu0
        %v1193 = vadd.f32 0.0, %v1192
        %v1194 = vpop.f32.mrb[0].mxu0
        %1195 = vmatprep.mubr.bf16.mxu0 %v1076
        %1196 = vmatmul.mubr.bf16.gmra.mrb[0].mxu0 %v947
        %v1197 = vpop.f32.mrb[0].mxu0
        %v1198 = vadd.f32 0.0, %v1197
        %v1199 = vpop.f32.mrb[0].mxu0
        %v1200 = vpop.f32.mrb[0].mxu0
        %v1201 = vadd.f32 0.0, %v1200
        %v1202 = vpop.f32.mrb[0].mxu0
        %1203 = vmatprep.mubr.bf16.mxu0 %v1079
        %1204 = vmatmul.mubr.bf16.gmra.mrb[0].mxu0 %v949
        %v1205 = vpop.f32.mrb[0].mxu0
        %v1206 = vadd.f32 0.0, %v1205
        %v1207 = vpop.f32.mrb[0].mxu0
        %v1208 = vpop.f32.mrb[0].mxu0
        %v1209 = vadd.f32 0.0, %v1208
        %v1210 = vpop.f32.mrb[0].mxu0
        %1211 = vmatprep.mubr.bf16.mxu0 %v1082
        %1212 = vmatmul.mubr.bf16.gmra.mrb[0].mxu0 %v951
        %v1213 = vpop.f32.mrb[0].mxu0
        %v1214 = vadd.f32 0.0, %v1213
        %v1215 = vpop.f32.mrb[0].mxu0
        %v1216 = vpop.f32.mrb[0].mxu0
        %v1217 = vadd.f32 0.0, %v1216
        %v1218 = vpop.f32.mrb[0].mxu0
        %1219 = vmatprep.mubr.bf16.mxu0 %v1085
        %1220 = vmatmul.mubr.bf16.gmra.mrb[0].mxu0 %v953
        %v1221 = vpop.f32.mrb[0].mxu0
        %v1222 = vadd.f32 0.0, %v1221
        %v1223 = vpop.f32.mrb[0].mxu0
        %v1224 = vpop.f32.mrb[0].mxu0
        %v1225 = vadd.f32 0.0, %v1224
        %v1226 = vpop.f32.mrb[0].mxu0
        %1227 = vmatprep.mubr.bf16.mxu0 %v1088
        %1228 = vmatmul.mubr.bf16.gmra.mrb[0].mxu0 %v955
        %v1229 = vpop.f32.mrb[0].mxu0
        %v1230 = vadd.f32 0.0, %v1229
        %v1231 = vpop.f32.mrb[0].mxu0
        %v1232 = vpop.f32.mrb[0].mxu0
        %v1233 = vadd.f32 0.0, %v1232
        %v1234 = vpop.f32.mrb[0].mxu0
        %1235 = vmatprep.mubr.bf16.mxu0 %v1091
        %1236 = vmatmul.mubr.bf16.gmra.mrb[0].mxu0 %v957
        %v1237 = vpop.f32.mrb[0].mxu0
        %v1238 = vadd.f32 0.0, %v1237
        %v1239 = vpop.f32.mrb[0].mxu0
        %v1240 = vpop.f32.mrb[0].mxu0
        %v1241 = vadd.f32 0.0, %v1240
        %v1242 = vpop.f32.mrb[0].mxu0
        %1243 = vmatprep.mubr.bf16.mxu0 %v1094
        %1244 = vmatmul.mubr.bf16.gmra.mrb[0].mxu0 %v959
        %v1245 = vpop.f32.mrb[0].mxu0
        %v1246 = vadd.f32 0.0, %v1245
        %v1247 = vpop.f32.mrb[0].mxu0
        %v1248 = vpop.f32.mrb[0].mxu0
        %v1249 = vadd.f32 0.0, %v1248
        %v1250 = vpop.f32.mrb[0].mxu0
        %1251 = vmatprep.mubr.bf16.mxu0 %v1097
        %1252 = vmatmul.mubr.bf16.gmra.mrb[0].mxu0 %v961
        %v1253 = vpop.f32.mrb[0].mxu0
        %v1254 = vadd.f32 0.0, %v1253
        %v1255 = vpop.f32.mrb[0].mxu0
        %v1256 = vpop.f32.mrb[0].mxu0
        %v1257 = vadd.f32 0.0, %v1256
        %v1258 = vpop.f32.mrb[0].mxu0
        %1259 = vdwg.mxu0
        %v1268 = vunpack.c.l.b16 %v771
        %v1269 = vunpack.c.l.b16 %v772
        %v1270 = vunpack.c.l.b16 %v773
        %v1271 = vunpack.c.l.b16 %v774
        %v1272 = vunpack.c.l.b16 %v775
        %v1273 = vunpack.c.l.b16 %v776
        %v1274 = vunpack.c.l.b16 %v777
        %v1275 = vunpack.c.l.b16 %v778
        %v1276 = vpack.c.b16 %v1269, %v1268
        %v1277 = vpack.c.b16 %v1271, %v1270
        %v1278 = vpack.c.b16 %v1273, %v1272
        %v1279 = vpack.c.b16 %v1275, %v1274
        %v1285 = vsel %vm513, %v755, 0
        %v1288 = vsel %vm513, %v756, 0
        %v1291 = vsel %vm513, %v757, 0
        %v1294 = vsel %vm513, %v758, 0
        %v1297 = vsel %vm513, %v759, 0
        %v1300 = vsel %vm513, %v760, 0
        %v1303 = vsel %vm513, %v761, 0
        %v1306 = vsel %vm513, %v762, 0
        %v1309 = vsel %vm513, %v763, 0
        %v1312 = vsel %vm513, %v764, 0
        %v1315 = vsel %vm513, %v765, 0
        %v1318 = vsel %vm513, %v766, 0
        %v1321 = vsel %vm513, %v767, 0
        %v1324 = vsel %vm513, %v768, 0
        %v1327 = vsel %vm513, %v769, 0
        %v1330 = vsel %vm513, %v770, 0
        %1332 = vmatprep.subr.bf16.mxu0 0
        %1333 = vmatpush1.bf16.msra.mxu0 %v1276
        %1334 = vmatprep.subr.bf16.mxu0 0
        %1335 = vmatpush1.bf16.msra.mxu0 %v1277
        %1336 = vmatprep.subr.bf16.mxu0 0
        %1337 = vmatpush1.bf16.msra.mxu0 %v1278
        %1338 = vmatprep.subr.bf16.mxu0 0
        %1339 = vmatpush1.bf16.msra.mxu0 %v1279
        %1340 = vmatprep.subr.bf16.mxu0 0
        %1341 = vmatpush1.bf16.msra.mxu0 0
        %1342 = vmatprep.subr.bf16.mxu0 0
        %1343 = vmatpush1.bf16.msra.mxu0 0
        %1344 = vmatprep.subr.bf16.mxu0 0
        %1345 = vmatpush1.bf16.msra.mxu0 0
        %1346 = vmatprep.subr.bf16.mxu0 0
        %1347 = vmatpush1.bf16.msra.mxu0 0
        %1348 = vmatprep.subr.bf16.mxu0 0
        %1349 = vmatpush1.bf16.msra.mxu0 0
        %1350 = vmatprep.subr.bf16.mxu0 0
        %1351 = vmatpush1.bf16.msra.mxu0 0
        %1352 = vmatprep.subr.bf16.mxu0 0
        %1353 = vmatpush1.bf16.msra.mxu0 0
        %1354 = vmatprep.subr.bf16.mxu0 0
        %1355 = vmatpush1.bf16.msra.mxu0 0
        %1356 = vmatprep.subr.bf16.mxu0 0
        %1357 = vmatpush1.bf16.msra.mxu0 0
        %1358 = vmatprep.subr.bf16.mxu0 0
        %1359 = vmatpush1.bf16.msra.mxu0 0
        %1360 = vmatprep.subr.bf16.mxu0 0
        %1361 = vmatpush1.bf16.msra.mxu0 0
        %1362 = vmatprep.subr.bf16.mxu0 0
        %1363 = vmatpush1.bf16.msra.mxu0 0
        %1364 = vmatprep.mubr.bf16.mxu0 0
        %1365 = vmatmul.mubr.bf16.gmra.mrb[0].mxu0 %v1285
        %v1366 = vpop.f32.mrb[0].mxu0
        %v1367 = vadd.f32 %v1134, %v1366
        %v1368 = vpop.f32.mrb[0].mxu0
        %v1369 = vpop.f32.mrb[0].mxu0
        %v1370 = vadd.f32 %v1137, %v1369
        %v1371 = vpop.f32.mrb[0].mxu0
        %1372 = vmatprep.mubr.bf16.mxu0 0
        %1373 = vmatmul.mubr.bf16.gmra.mrb[0].mxu0 %v1288
        %v1374 = vpop.f32.mrb[0].mxu0
        %v1375 = vadd.f32 %v1142, %v1374
        %v1376 = vpop.f32.mrb[0].mxu0
        %v1377 = vpop.f32.mrb[0].mxu0
        %v1378 = vadd.f32 %v1145, %v1377
        %v1379 = vpop.f32.mrb[0].mxu0
        %1380 = vmatprep.mubr.bf16.mxu0 0
        %1381 = vmatmul.mubr.bf16.gmra.mrb[0].mxu0 %v1291
        %v1382 = vpop.f32.mrb[0].mxu0
        %v1383 = vadd.f32 %v1150, %v1382
        %v1384 = vpop.f32.mrb[0].mxu0
        %v1385 = vpop.f32.mrb[0].mxu0
        %v1386 = vadd.f32 %v1153, %v1385
        %v1387 = vpop.f32.mrb[0].mxu0
        %1388 = vmatprep.mubr.bf16.mxu0 0
        %1389 = vmatmul.mubr.bf16.gmra.mrb[0].mxu0 %v1294
        %v1390 = vpop.f32.mrb[0].mxu0
        %v1391 = vadd.f32 %v1158, %v1390
        %v1392 = vpop.f32.mrb[0].mxu0
        %v1393 = vpop.f32.mrb[0].mxu0
        %v1394 = vadd.f32 %v1161, %v1393
        %v1395 = vpop.f32.mrb[0].mxu0
        %1396 = vmatprep.mubr.bf16.mxu0 0
        %1397 = vmatmul.mubr.bf16.gmra.mrb[0].mxu0 %v1297
        %v1398 = vpop.f32.mrb[0].mxu0
        %v1399 = vadd.f32 %v1166, %v1398
        %v1400 = vpop.f32.mrb[0].mxu0
        %v1401 = vpop.f32.mrb[0].mxu0
        %v1402 = vadd.f32 %v1169, %v1401
        %v1403 = vpop.f32.mrb[0].mxu0
        %1404 = vmatprep.mubr.bf16.mxu0 0
        %1405 = vmatmul.mubr.bf16.gmra.mrb[0].mxu0 %v1300
        %v1406 = vpop.f32.mrb[0].mxu0
        %v1407 = vadd.f32 %v1174, %v1406
        %v1408 = vpop.f32.mrb[0].mxu0
        %v1409 = vpop.f32.mrb[0].mxu0
        %v1410 = vadd.f32 %v1177, %v1409
        %v1411 = vpop.f32.mrb[0].mxu0
        %1412 = vmatprep.mubr.bf16.mxu0 0
        %1413 = vmatmul.mubr.bf16.gmra.mrb[0].mxu0 %v1303
        %v1414 = vpop.f32.mrb[0].mxu0
        %v1415 = vadd.f32 %v1182, %v1414
        %v1416 = vpop.f32.mrb[0].mxu0
        %v1417 = vpop.f32.mrb[0].mxu0
        %v1418 = vadd.f32 %v1185, %v1417
        %v1419 = vpop.f32.mrb[0].mxu0
        %1420 = vmatprep.mubr.bf16.mxu0 0
        %1421 = vmatmul.mubr.bf16.gmra.mrb[0].mxu0 %v1306
        %v1422 = vpop.f32.mrb[0].mxu0
        %v1423 = vadd.f32 %v1190, %v1422
        %v1424 = vpop.f32.mrb[0].mxu0
        %v1425 = vpop.f32.mrb[0].mxu0
        %v1426 = vadd.f32 %v1193, %v1425
        %v1427 = vpop.f32.mrb[0].mxu0
        %1428 = vmatprep.mubr.bf16.mxu0 0
        %1429 = vmatmul.mubr.bf16.gmra.mrb[0].mxu0 %v1309
        %v1430 = vpop.f32.mrb[0].mxu0
        %v1431 = vadd.f32 %v1198, %v1430
        %v1432 = vpop.f32.mrb[0].mxu0
        %v1433 = vpop.f32.mrb[0].mxu0
        %v1434 = vadd.f32 %v1201, %v1433
        %v1435 = vpop.f32.mrb[0].mxu0
        %1436 = vmatprep.mubr.bf16.mxu0 0
        %1437 = vmatmul.mubr.bf16.gmra.mrb[0].mxu0 %v1312
        %v1438 = vpop.f32.mrb[0].mxu0
        %v1439 = vadd.f32 %v1206, %v1438
        %v1440 = vpop.f32.mrb[0].mxu0
        %v1441 = vpop.f32.mrb[0].mxu0
        %v1442 = vadd.f32 %v1209, %v1441
        %v1443 = vpop.f32.mrb[0].mxu0
        %1444 = vmatprep.mubr.bf16.mxu0 0
        %1445 = vmatmul.mubr.bf16.gmra.mrb[0].mxu0 %v1315
        %v1446 = vpop.f32.mrb[0].mxu0
        %v1447 = vadd.f32 %v1214, %v1446
        %v1448 = vpop.f32.mrb[0].mxu0
        %v1449 = vpop.f32.mrb[0].mxu0
        %v1450 = vadd.f32 %v1217, %v1449
        %v1451 = vpop.f32.mrb[0].mxu0
        %1452 = vmatprep.mubr.bf16.mxu0 0
        %1453 = vmatmul.mubr.bf16.gmra.mrb[0].mxu0 %v1318
        %v1454 = vpop.f32.mrb[0].mxu0
        %v1455 = vadd.f32 %v1222, %v1454
        %v1456 = vpop.f32.mrb[0].mxu0
        %v1457 = vpop.f32.mrb[0].mxu0
        %v1458 = vadd.f32 %v1225, %v1457
        %v1459 = vpop.f32.mrb[0].mxu0
        %1460 = vmatprep.mubr.bf16.mxu0 0
        %1461 = vmatmul.mubr.bf16.gmra.mrb[0].mxu0 %v1321
        %v1462 = vpop.f32.mrb[0].mxu0
        %v1463 = vadd.f32 %v1230, %v1462
        %v1464 = vpop.f32.mrb[0].mxu0
        %v1465 = vpop.f32.mrb[0].mxu0
        %v1466 = vadd.f32 %v1233, %v1465
        %v1467 = vpop.f32.mrb[0].mxu0
        %1468 = vmatprep.mubr.bf16.mxu0 0
        %1469 = vmatmul.mubr.bf16.gmra.mrb[0].mxu0 %v1324
        %v1470 = vpop.f32.mrb[0].mxu0
        %v1471 = vadd.f32 %v1238, %v1470
        %v1472 = vpop.f32.mrb[0].mxu0
        %v1473 = vpop.f32.mrb[0].mxu0
        %v1474 = vadd.f32 %v1241, %v1473
        %v1475 = vpop.f32.mrb[0].mxu0
        %1476 = vmatprep.mubr.bf16.mxu0 0
        %1477 = vmatmul.mubr.bf16.gmra.mrb[0].mxu0 %v1327
        %v1478 = vpop.f32.mrb[0].mxu0
        %v1479 = vadd.f32 %v1246, %v1478
        %v1480 = vpop.f32.mrb[0].mxu0
        %v1481 = vpop.f32.mrb[0].mxu0
        %v1482 = vadd.f32 %v1249, %v1481
        %v1483 = vpop.f32.mrb[0].mxu0
        %1484 = vmatprep.mubr.bf16.mxu0 0
        %1485 = vmatmul.mubr.bf16.gmra.mrb[0].mxu0 %v1330
        %v1486 = vpop.f32.mrb[0].mxu0
        %v1487 = vadd.f32 %v1254, %v1486
        %v1488 = vpop.f32.mrb[0].mxu0
        %v1489 = vpop.f32.mrb[0].mxu0
        %v1490 = vadd.f32 %v1257, %v1489
        %v1491 = vpop.f32.mrb[0].mxu0
        %1492 = vdwg.mxu0
        %v1493 = vld [vmem:[%s359] sm:$0x1]
        %v1495 = vlaneseq
        %v1496 = vshrl.u32 %v1495, 7
        %v1497 = vsub.s32 0, %v1496
        %v1498 = vrot.slane %v1493, %v1497
        %v1500 = vadd.f32 %v1367, %v1498
        %v1501 = vadd.f32 %v1370, %v1498
        %v1502 = vadd.f32 %v1375, %v1498
        %v1503 = vadd.f32 %v1378, %v1498
        %v1504 = vadd.f32 %v1383, %v1498
        %v1505 = vadd.f32 %v1386, %v1498
        %v1506 = vadd.f32 %v1391, %v1498
        %v1507 = vadd.f32 %v1394, %v1498
        %v1508 = vadd.f32 %v1399, %v1498
        %v1509 = vadd.f32 %v1402, %v1498
        %v1510 = vadd.f32 %v1407, %v1498
        %v1511 = vadd.f32 %v1410, %v1498
        %v1512 = vadd.f32 %v1415, %v1498
        %v1513 = vadd.f32 %v1418, %v1498
        %v1514 = vadd.f32 %v1423, %v1498
        %v1515 = vadd.f32 %v1426, %v1498
        %v1516 = vadd.f32 %v1431, %v1498
        %v1517 = vadd.f32 %v1434, %v1498
        %v1518 = vadd.f32 %v1439, %v1498
        %v1519 = vadd.f32 %v1442, %v1498
        %v1520 = vadd.f32 %v1447, %v1498
        %v1521 = vadd.f32 %v1450, %v1498
        %v1522 = vadd.f32 %v1455, %v1498
        %v1523 = vadd.f32 %v1458, %v1498
        %v1524 = vadd.f32 %v1463, %v1498
        %v1525 = vadd.f32 %v1466, %v1498
        %v1526 = vadd.f32 %v1471, %v1498
        %v1527 = vadd.f32 %v1474, %v1498
        %v1528 = vadd.f32 %v1479, %v1498
        %v1529 = vadd.f32 %v1482, %v1498
        %v1530 = vadd.f32 %v1487, %v1498
        %v1531 = vadd.f32 %v1490, %v1498
        %v1532 = vmax.f32 %v1500, 0.0
        %v1533 = vmax.f32 %v1501, 0.0
        %v1534 = vmax.f32 %v1502, 0.0
        %v1535 = vmax.f32 %v1503, 0.0
        %v1536 = vmax.f32 %v1504, 0.0
        %v1537 = vmax.f32 %v1505, 0.0
        %v1538 = vmax.f32 %v1506, 0.0
        %v1539 = vmax.f32 %v1507, 0.0
        %v1540 = vmax.f32 %v1508, 0.0
        %v1541 = vmax.f32 %v1509, 0.0
        %v1542 = vmax.f32 %v1510, 0.0
        %v1543 = vmax.f32 %v1511, 0.0
        %v1544 = vmax.f32 %v1512, 0.0
        %v1545 = vmax.f32 %v1513, 0.0
        %v1546 = vmax.f32 %v1514, 0.0
        %v1547 = vmax.f32 %v1515, 0.0
        %v1548 = vmax.f32 %v1516, 0.0
        %v1549 = vmax.f32 %v1517, 0.0
        %v1550 = vmax.f32 %v1518, 0.0
        %v1551 = vmax.f32 %v1519, 0.0
        %v1552 = vmax.f32 %v1520, 0.0
        %v1553 = vmax.f32 %v1521, 0.0
        %v1554 = vmax.f32 %v1522, 0.0
        %v1555 = vmax.f32 %v1523, 0.0
        %v1556 = vmax.f32 %v1524, 0.0
        %v1557 = vmax.f32 %v1525, 0.0
        %v1558 = vmax.f32 %v1526, 0.0
        %v1559 = vmax.f32 %v1527, 0.0
        %v1560 = vmax.f32 %v1528, 0.0
        %v1561 = vmax.f32 %v1529, 0.0
        %v1562 = vmax.f32 %v1530, 0.0
        %v1563 = vmax.f32 %v1531, 0.0
        %1564 = vst.msk [vmem:[%s335] sm:$0xff] %vm513, %v1532
        %1565 = vst.msk [vmem:[%s335 + $0x8] sm:$0xff] %vm513, %v1533
        %1566 = vst.msk [vmem:[%s335 + $0x10] sm:$0xff] %vm513, %v1534
        %1567 = vst.msk [vmem:[%s335 + $0x18] sm:$0xff] %vm513, %v1535
        %1568 = vst.msk [vmem:[%s335 + $0x20] sm:$0xff] %vm513, %v1536
        %1569 = vst.msk [vmem:[%s335 + $0x28] sm:$0xff] %vm513, %v1537
        %1570 = vst.msk [vmem:[%s335 + $0x30] sm:$0xff] %vm513, %v1538
        %1571 = vst.msk [vmem:[%s335 + $0x38] sm:$0xff] %vm513, %v1539
        %1572 = vst.msk [vmem:[%s335 + $0x40] sm:$0xff] %vm513, %v1540
        %1573 = vst.msk [vmem:[%s335 + $0x48] sm:$0xff] %vm513, %v1541
        %1574 = vst.msk [vmem:[%s335 + $0x50] sm:$0xff] %vm513, %v1542
        %1575 = vst.msk [vmem:[%s335 + $0x58] sm:$0xff] %vm513, %v1543
        %1576 = vst.msk [vmem:[%s335 + $0x60] sm:$0xff] %vm513, %v1544
        %1577 = vst.msk [vmem:[%s335 + $0x68] sm:$0xff] %vm513, %v1545
        %1578 = vst.msk [vmem:[%s335 + $0x70] sm:$0xff] %vm513, %v1546
        %1579 = vst.msk [vmem:[%s335 + $0x78] sm:$0xff] %vm513, %v1547
        %1580 = vst.msk [vmem:[%s335 + $0x80] sm:$0xff] %vm513, %v1548
        %1581 = vst.msk [vmem:[%s335 + $0x88] sm:$0xff] %vm513, %v1549
        %1582 = vst.msk [vmem:[%s335 + $0x90] sm:$0xff] %vm513, %v1550
        %1583 = vst.msk [vmem:[%s335 + $0x98] sm:$0xff] %vm513, %v1551
        %1584 = vst.msk [vmem:[%s335 + $0xa0] sm:$0xff] %vm513, %v1552
        %1585 = vst.msk [vmem:[%s335 + $0xa8] sm:$0xff] %vm513, %v1553
        %1586 = vst.msk [vmem:[%s335 + $0xb0] sm:$0xff] %vm513, %v1554
        %1587 = vst.msk [vmem:[%s335 + $0xb8] sm:$0xff] %vm513, %v1555
        %1588 = vst.msk [vmem:[%s335 + $0xc0] sm:$0xff] %vm513, %v1556
        %1589 = vst.msk [vmem:[%s335 + $0xc8] sm:$0xff] %vm513, %v1557
        %1590 = vst.msk [vmem:[%s335 + $0xd0] sm:$0xff] %vm513, %v1558
        %1591 = vst.msk [vmem:[%s335 + $0xd8] sm:$0xff] %vm513, %v1559
        %1592 = vst.msk [vmem:[%s335 + $0xe0] sm:$0xff] %vm513, %v1560
        %1593 = vst.msk [vmem:[%s335 + $0xe8] sm:$0xff] %vm513, %v1561
        %1594 = vst.msk [vmem:[%s335 + $0xf0] sm:$0xff] %vm513, %v1562
        %1595 = vst.msk [vmem:[%s335 + $0xf8] sm:$0xff] %vm513, %v1563
        %s1596 = sand.u32 %s209, 1
        %s1597 = scalar_lea.sflag [#allocation3], %s1596
        %s1598 = sand.u32 %s209, 1
        %s1599 = smul.addr %s1598, 256
        %s1600 = scalar_lea.vmem [#allocation2], %s1599
        // Predicated region
        $region49: #{trans_conv_forward.1} parent=47 // pred_check
          %p1601 = pneg %p219
        $region50: #{trans_conv_forward.1} parent=47 // pred_check_branch
          %1603 = sbr.rel (%p1601) target = $region52
        $region51: #{trans_conv_forward.1} parent=47 // pred_region
          %s1604 = smul.u32 32, %s26
          %s1606 = ssub.s32 4096, 4096
          %1607 = vsyncadd %s1597, %s1606
          %s1608 = smul.addr %s25, 32
          %s1609 = sadd.s32 %s1604, %s1608
          %s1610 = smul.addr %s1609, 128
          %s1611 = scalar_lea.hbm %s7, %s1610
          %s1612 = sshll.u32 %s1600, 4
          %s1613 = int_to_ptr.vmem [resolvable:$true] %s1612
          %1618 = dma.vmem_to_hbm [thread:$0]  %s1613, 4096, %s1611, %s1597, 128, 128, 8
        $region52: #{trans_conv_forward.1} parent=47 // pred_fallthru
          _
      $region48: #{trans_conv_forward.1} parent=5 // pred_fallthru
        _
      %p1619 = scmp.le.s32.totalorder 2, %s16
      // Predicated region
      $region53: #{trans_conv_forward.1} parent=5 // pred_check
        %p1620 = pneg %p1619
      $region54: #{trans_conv_forward.1} parent=5 // pred_check_branch
        %1622 = sbr.rel (%p1620) target = $region56
      $region55: #{trans_conv_forward.1} parent=5 // pred_region
        %s1623 = ssub.s32 %s16, 2
        // Predicated region
        $region57: #{trans_conv_forward.1} parent=55 // pred_check
          %p1624 = pneg %p225
        $region58: #{trans_conv_forward.1} parent=55 // pred_check_branch
          %1626 = sbr.rel (%p1624) target = $region60
        $region59: #{trans_conv_forward.1} parent=55 // pred_region
          %s1627 = sand.u32 %s210, 1
          %s1628 = scalar_lea.sflag [#allocation3], %s1627
          %s1629 = sand.u32 %s210, 1
          %s1630 = smul.addr %s1629, 256
          %s1631 = scalar_lea.vmem [#allocation2], %s1630
          %1632 = dma.done %s1628, 4096
        $region60: #{trans_conv_forward.1} parent=55 // pred_fallthru
          _
      $region56: #{trans_conv_forward.1} parent=5 // pred_fallthru
        _
    $region6: #{trans_conv_forward.1} parent=1 // loop_footer
      %s20 = sadd.s32 1, %s16
    $region7: #{trans_conv_forward.1} parent=1 // loop_footer_branch
      %15 = sbr.rel target = $region3
    $region8: #{trans_conv_forward.1} parent=1 // loop_exit
      _
    %1633 = vsyncpa [#allocation3], 1
    %s1634 = scalar_lea.sflag [#allocation3], 1
    %1635 = vsyncpa %s1634, 1

</llo_original>
